<compile_context>
chip_gen: v6e
topology: v6e:2x2x1
jax: 0.10.0
libtpu: 0.0.40
codegen_flags: <defaults>
</compile_context>

<pallas_src>
import functools
import numpy as np
import jax
import jax.numpy as jnp
from jax import lax
from jax.experimental import pallas as pl
from jax.experimental.pallas import tpu as pltpu


def dqn_cnn_kernel(x_ref, w1_ref, b1_ref, w2_ref, b2_ref,
                   wf1_ref, bf1_ref, wf2_ref, bf2_ref, wf3_ref, bf3_ref,
                   wo_ref, bo_ref, out_ref):
    f32 = jnp.float32
    TB = out_ref.shape[1]              # batch tile (lanes)
    S = x_ref.shape[1] // TB           # sequence length
    C1 = w1_ref.shape[0]               # conv1 out channels (16)
    C2 = w2_ref.shape[0]               # conv2 out channels (32)
    J = S // 2                         # pooled length

    # ---- conv1: 1 -> C1 channels, k=3, pad=1 (single MXU matmul) -----------
    # x lanes are ordered (s major, b minor); a shift of +/-1 in s is a
    # whole-TB (128-aligned) lane slice + zero block -> cheap, exact pad.
    x = x_ref[...]                                           # (1, S*TB)
    zx = jnp.zeros((1, TB), f32)
    x_m1 = jnp.concatenate([zx, x[:, :(S - 1) * TB]], axis=1)   # pos s-1
    x_p1 = jnp.concatenate([x[:, TB:], zx], axis=1)             # pos s+1
    x_taps = jnp.concatenate([x_m1, x, x_p1], axis=0)        # (3, S*TB)

    h1 = jnp.maximum(
        jnp.dot(w1_ref[...], x_taps, preferred_element_type=f32) + b1_ref[...],
        0.0)                                                 # (C1, S*TB)

    # ---- conv2: C1 -> C2 channels, k=3, pad=1 (im2col -> single matmul) ----
    zh = jnp.zeros((C1, TB), f32)
    h1_m1 = jnp.concatenate([zh, h1[:, :(S - 1) * TB]], axis=1)
    h1_p1 = jnp.concatenate([h1[:, TB:], zh], axis=1)
    h1_taps = jnp.concatenate([h1_m1, h1, h1_p1], axis=0)    # (3*C1, S*TB)

    h2 = jnp.maximum(
        jnp.dot(w2_ref[...], h1_taps, preferred_element_type=f32) + b2_ref[...],
        0.0)                                                 # (C2, S*TB)

    # ---- maxpool(2) along s + flatten -------------------------------------
    # Pooling pairs are adjacent whole-TB lane slices -> pure VPU max of full
    # vregs.  Pooled row order is (j major, c2 minor); wf1 was re-ordered
    # wrapper-side to match torch's channel-major flatten exactly, so fc1 is
    # one big K = J*C2 matmul.
    pooled = jnp.concatenate(
        [jnp.maximum(h2[:, (2 * j) * TB:(2 * j + 1) * TB],
                     h2[:, (2 * j + 1) * TB:(2 * j + 2) * TB])
         for j in range(J)],
        axis=0)                                              # (J*C2, TB)

    # ---- fc1 / fc2 / fc3 / fc_output (W @ act, batch stays in lanes) ------
    a = jnp.maximum(
        jnp.dot(wf1_ref[...], pooled, preferred_element_type=f32) + bf1_ref[...],
        0.0)                                                 # (H, TB)
    a = jnp.maximum(
        jnp.dot(wf2_ref[...], a, preferred_element_type=f32) + bf2_ref[...],
        0.0)
    a = jnp.maximum(
        jnp.dot(wf3_ref[...], a, preferred_element_type=f32) + bf3_ref[...],
        0.0)
    out_ref[...] = (jnp.dot(wo_ref[...], a, preferred_element_type=f32)
                    + bo_ref[...])                           # (A_pad, TB)


def _round_up(v, m):
    return ((v + m - 1) // m) * m


@functools.partial(jax.jit, static_argnames=("block_b",))
def dqn_cnn_forward(x, params, *, block_b=512):
    (w1, b1, w2, b2, wf1, bf1, wf2, bf2, wf3, bf3, wo, bo) = params
    B, S = x.shape
    C1 = w1.shape[0]            # 16
    C2 = w2.shape[0]            # 32
    H = wf2.shape[0]            # hidden
    A = wo.shape[0]             # action_dim
    J = S // 2
    A_pad = _round_up(A, 8)     # pad output rows -> unmasked sublane stores

    # Batch tile: multiple of 128 lanes, capped at block_b (sized so all
    # intermediates fit comfortably even in v7x's smaller VMEM). Pad B to G*TB.
    TB = _round_up(min(block_b, _round_up(B, 128)), 128)
    B_pad = _round_up(B, TB)
    G = B_pad // TB

    # ---- plain-JAX layout plumbing (cheap, outside the kernel) -------------
    xf = x.astype(jnp.float32)
    if B_pad != B:
        xf = jnp.pad(xf, ((0, B_pad - B), (0, 0)))
    # (B_pad, S) -> (G, 1, S*TB) with lane index = s*TB + b_local
    x_r = xf.reshape(G, TB, S).transpose(0, 2, 1).reshape(G, 1, S * TB)

    w1_r = w1[:, 0, :].astype(jnp.float32)                            # (C1, 3)
    # conv2 im2col weight: column index = k*C1 + c1
    w2_r = jnp.transpose(w2, (0, 2, 1)).reshape(C2, 3 * C1).astype(jnp.float32)
    # fc1 weight re-ordered so column index = j*C2 + c2 matches the kernel's
    # pooled row order (torch flatten is c2*J + j).
    wf1_r = (wf1.reshape(H, C2, J).transpose(0, 2, 1)
             .reshape(H, J * C2).astype(jnp.float32))
    # fc_output padded with zero rows to A_pad for unmasked sublane stores.
    wo_r = jnp.zeros((A_pad, H), jnp.float32).at[:A].set(wo.astype(jnp.float32))
    bo_r = jnp.zeros((A_pad, 1), jnp.float32).at[:A, 0].set(bo.astype(jnp.float32))

    def col(b):
        return b.reshape(-1, 1).astype(jnp.float32)

    args = (x_r, w1_r, col(b1), w2_r, col(b2),
            wf1_r, col(bf1), wf2.astype(jnp.float32), col(bf2),
            wf3.astype(jnp.float32), col(bf3),
            wo_r, bo_r)

    def full_spec(a):
        # Same block every grid step -> stays resident in VMEM (no re-DMA).
        return pl.BlockSpec(a.shape, lambda g, nd=a.ndim: (0,) * nd)

    in_specs = [pl.BlockSpec((None, 1, S * TB), lambda g: (g, 0, 0))]
    in_specs += [full_spec(a) for a in args[1:]]

    out = pl.pallas_call(
        dqn_cnn_kernel,
        out_shape=jax.ShapeDtypeStruct((A_pad, B_pad), jnp.float32),
        grid_spec=pltpu.PrefetchScalarGridSpec(
            num_scalar_prefetch=0,
            grid=(G,),
            in_specs=in_specs,
            out_specs=pl.BlockSpec((A_pad, TB), lambda g: (0, g)),
        ),
        compiler_params=pltpu.CompilerParams(
            dimension_semantics=("parallel",),
            vmem_limit_bytes=32 * 1024 * 1024),
    )(*args)
    return jnp.transpose(out)[:B, :A]                        # (B, A)


def torch_reference(x, params):
    """Pure-JAX reference reproducing the PyTorch forward exactly."""
    (w1, b1, w2, b2, wf1, bf1, wf2, bf2, wf3, bf3, wo, bo) = params
    B, S = x.shape
    hp = lax.Precision.HIGHEST
    h = x[:, None, :]                                            # (B,1,S)
    h = lax.conv_general_dilated(h, w1, (1,), [(1, 1)],
                                 dimension_numbers=("NCH", "OIH", "NCH"),
                                 precision=hp)
    h = jax.nn.relu(h + b1[None, :, None])
    h = lax.conv_general_dilated(h, w2, (1,), [(1, 1)],
                                 dimension_numbers=("NCH", "OIH", "NCH"),
                                 precision=hp)
    h = jax.nn.relu(h + b2[None, :, None])
    h = jnp.max(h.reshape(B, h.shape[1], S // 2, 2), axis=-1)    # MaxPool1d(2)
    h = h.reshape(B, -1)                                         # channel-major flatten
    h = jax.nn.relu(jnp.dot(h, wf1.T, precision=hp) + bf1)
    h = jax.nn.relu(jnp.dot(h, wf2.T, precision=hp) + bf2)
    h = jax.nn.relu(jnp.dot(h, wf3.T, precision=hp) + bf3)
    return jnp.dot(h, wo.T, precision=hp) + bo


if __name__ == "__main__":
    STATE_DIM, ACTION_DIM, HIDDEN, BATCH = 16, 4, 32, 2

    key = jax.random.PRNGKey(0)
    keys = jax.random.split(key, 13)

    def init(k, shape):
        return (0.1 * jax.random.normal(k, shape)).astype(jnp.float32)

    params = (
        init(keys[0], (16, 1, 3)),  init(keys[1], (16,)),                      # conv1
        init(keys[2], (32, 16, 3)), init(keys[3], (32,)),                      # conv2
        init(keys[4], (HIDDEN, 32 * (STATE_DIM // 2))), init(keys[5], (HIDDEN,)),  # fc1
        init(keys[6], (HIDDEN, HIDDEN)), init(keys[7], (HIDDEN,)),             # fc2
        init(keys[8], (HIDDEN, HIDDEN)), init(keys[9], (HIDDEN,)),             # fc3
        init(keys[10], (ACTION_DIM, HIDDEN)), init(keys[11], (ACTION_DIM,)),   # fc_output
    )
    x = jax.random.normal(keys[12], (BATCH, STATE_DIM), dtype=jnp.float32)

    out = jax.block_until_ready(dqn_cnn_forward(x, params))
    ref = jax.block_until_ready(torch_reference(x, params))

    assert out.shape == (BATCH, ACTION_DIM)
    np.testing.assert_allclose(np.asarray(out), np.asarray(ref),
                               rtol=2e-3, atol=2e-3)
    print("KERNEL_OK")
</pallas_src>

<mosaic_0001>
module attributes {stable_mosaic.version = 11 : i64} {
  func.func @dqn_cnn_kernel(%arg0: i32, %arg1: memref<1x1x2048xf32, #tpu.memory_space<vmem>>, %arg2: memref<16x3xf32, #tpu.memory_space<vmem>>, %arg3: memref<16x1xf32, #tpu.memory_space<vmem>>, %arg4: memref<32x48xf32, #tpu.memory_space<vmem>>, %arg5: memref<32x1xf32, #tpu.memory_space<vmem>>, %arg6: memref<32x256xf32, #tpu.memory_space<vmem>>, %arg7: memref<32x1xf32, #tpu.memory_space<vmem>>, %arg8: memref<32x32xf32, #tpu.memory_space<vmem>>, %arg9: memref<32x1xf32, #tpu.memory_space<vmem>>, %arg10: memref<32x32xf32, #tpu.memory_space<vmem>>, %arg11: memref<32x1xf32, #tpu.memory_space<vmem>>, %arg12: memref<8x32xf32, #tpu.memory_space<vmem>>, %arg13: memref<8x1xf32, #tpu.memory_space<vmem>>, %arg14: memref<8x128xf32, #tpu.memory_space<vmem>>) attributes {dimension_semantics = [#tpu.dimension_semantics<parallel>], iteration_bounds = array<i64: 1>, scalar_prefetch = 0 : i64, scratch_operands = 0 : i64, tpu.core_type = #tpu.core_type<tc>, window_params = [{transform_indices = @transform_0, window_bounds = array<i64: 1, 1, 2048>}, {pipeline_mode = #tpu.pipeline_mode<synchronous>, transform_indices = @transform_1, window_bounds = array<i64: 16, 3>}, {pipeline_mode = #tpu.pipeline_mode<synchronous>, transform_indices = @transform_2, window_bounds = array<i64: 16, 1>}, {pipeline_mode = #tpu.pipeline_mode<synchronous>, transform_indices = @transform_3, window_bounds = array<i64: 32, 48>}, {pipeline_mode = #tpu.pipeline_mode<synchronous>, transform_indices = @transform_4, window_bounds = array<i64: 32, 1>}, {pipeline_mode = #tpu.pipeline_mode<synchronous>, transform_indices = @transform_5, window_bounds = array<i64: 32, 256>}, {pipeline_mode = #tpu.pipeline_mode<synchronous>, transform_indices = @transform_6, window_bounds = array<i64: 32, 1>}, {pipeline_mode = #tpu.pipeline_mode<synchronous>, transform_indices = @transform_7, window_bounds = array<i64: 32, 32>}, {pipeline_mode = #tpu.pipeline_mode<synchronous>, transform_indices = @transform_8, window_bounds = array<i64: 32, 1>}, {pipeline_mode = #tpu.pipeline_mode<synchronous>, transform_indices = @transform_9, window_bounds = array<i64: 32, 32>}, {pipeline_mode = #tpu.pipeline_mode<synchronous>, transform_indices = @transform_10, window_bounds = array<i64: 32, 1>}, {pipeline_mode = #tpu.pipeline_mode<synchronous>, transform_indices = @transform_11, window_bounds = array<i64: 8, 32>}, {pipeline_mode = #tpu.pipeline_mode<synchronous>, transform_indices = @transform_12, window_bounds = array<i64: 8, 1>}, {transform_indices = @transform_13, window_bounds = array<i64: 8, 128>}]} {
    %c0 = arith.constant 0 : index
    %c0_0 = arith.constant 0 : index
    %c0_1 = arith.constant 0 : index
    %0 = vector.load %arg1[%c0, %c0_0, %c0_1] : memref<1x1x2048xf32, #tpu.memory_space<vmem>>, vector<1x1x2048xf32>
    %1 = vector.shape_cast %0 : vector<1x1x2048xf32> to vector<1x2048xf32>
    %cst = arith.constant 0.000000e+00 : f32
    %2 = vector.broadcast %cst : f32 to vector<1x128xf32>
    %3 = vector.extract_strided_slice %1 {offsets = [0, 0], sizes = [1, 1920], strides = [1, 1]} : vector<1x2048xf32> to vector<1x1920xf32>
    %4 = tpu.concatenate %2, %3 in 1 : vector<1x128xf32>, vector<1x1920xf32> -> vector<1x2048xf32>
    %5 = vector.extract_strided_slice %1 {offsets = [0, 128], sizes = [1, 1920], strides = [1, 1]} : vector<1x2048xf32> to vector<1x1920xf32>
    %6 = tpu.concatenate %5, %2 in 1 : vector<1x1920xf32>, vector<1x128xf32> -> vector<1x2048xf32>
    %7 = tpu.concatenate %4, %1, %6 in 0 : vector<1x2048xf32>, vector<1x2048xf32>, vector<1x2048xf32> -> vector<3x2048xf32>
    %c0_2 = arith.constant 0 : index
    %c0_3 = arith.constant 0 : index
    %8 = vector.load %arg2[%c0_2, %c0_3] : memref<16x3xf32, #tpu.memory_space<vmem>>, vector<16x3xf32>
    %cst_4 = arith.constant dense<0.000000e+00> : vector<16x2048xf32>
    %9 = tpu.matmul %8, %7, %cst_4 {dimension_numbers = #tpu.dot_dimension_numbers<[1], [0], [0], [1], [0, 0, 1, 1], [], []>} : vector<16x3xf32>, vector<3x2048xf32>, vector<16x2048xf32> -> vector<16x2048xf32>
    %c0_5 = arith.constant 0 : index
    %c0_6 = arith.constant 0 : index
    %10 = vector.load %arg3[%c0_5, %c0_6] : memref<16x1xf32, #tpu.memory_space<vmem>>, vector<16x1xf32>
    %11 = vector.broadcast %10 : vector<16x1xf32> to vector<16x2048xf32>
    %12 = arith.addf %9, %11 : vector<16x2048xf32>
    %cst_7 = arith.constant 0.000000e+00 : f32
    %13 = vector.broadcast %cst_7 : f32 to vector<16x2048xf32>
    %14 = arith.maximumf %12, %13 : vector<16x2048xf32>
    %cst_8 = arith.constant 0.000000e+00 : f32
    %15 = vector.broadcast %cst_8 : f32 to vector<16x128xf32>
    %16 = vector.extract_strided_slice %14 {offsets = [0, 0], sizes = [16, 1920], strides = [1, 1]} : vector<16x2048xf32> to vector<16x1920xf32>
    %17 = tpu.concatenate %15, %16 in 1 : vector<16x128xf32>, vector<16x1920xf32> -> vector<16x2048xf32>
    %18 = vector.extract_strided_slice %14 {offsets = [0, 128], sizes = [16, 1920], strides = [1, 1]} : vector<16x2048xf32> to vector<16x1920xf32>
    %19 = tpu.concatenate %18, %15 in 1 : vector<16x1920xf32>, vector<16x128xf32> -> vector<16x2048xf32>
    %20 = tpu.concatenate %17, %14, %19 in 0 : vector<16x2048xf32>, vector<16x2048xf32>, vector<16x2048xf32> -> vector<48x2048xf32>
    %c0_9 = arith.constant 0 : index
    %c0_10 = arith.constant 0 : index
    %21 = vector.load %arg4[%c0_9, %c0_10] : memref<32x48xf32, #tpu.memory_space<vmem>>, vector<32x48xf32>
    %cst_11 = arith.constant dense<0.000000e+00> : vector<32x2048xf32>
    %22 = tpu.matmul %21, %20, %cst_11 {dimension_numbers = #tpu.dot_dimension_numbers<[1], [0], [0], [1], [0, 0, 1, 1], [], []>} : vector<32x48xf32>, vector<48x2048xf32>, vector<32x2048xf32> -> vector<32x2048xf32>
    %c0_12 = arith.constant 0 : index
    %c0_13 = arith.constant 0 : index
    %23 = vector.load %arg5[%c0_12, %c0_13] : memref<32x1xf32, #tpu.memory_space<vmem>>, vector<32x1xf32>
    %24 = vector.broadcast %23 : vector<32x1xf32> to vector<32x2048xf32>
    %25 = arith.addf %22, %24 : vector<32x2048xf32>
    %cst_14 = arith.constant 0.000000e+00 : f32
    %26 = vector.broadcast %cst_14 : f32 to vector<32x2048xf32>
    %27 = arith.maximumf %25, %26 : vector<32x2048xf32>
    %28 = vector.extract_strided_slice %27 {offsets = [0, 0], sizes = [32, 128], strides = [1, 1]} : vector<32x2048xf32> to vector<32x128xf32>
    %29 = vector.extract_strided_slice %27 {offsets = [0, 128], sizes = [32, 128], strides = [1, 1]} : vector<32x2048xf32> to vector<32x128xf32>
    %30 = arith.maximumf %28, %29 : vector<32x128xf32>
    %31 = vector.extract_strided_slice %27 {offsets = [0, 256], sizes = [32, 128], strides = [1, 1]} : vector<32x2048xf32> to vector<32x128xf32>
    %32 = vector.extract_strided_slice %27 {offsets = [0, 384], sizes = [32, 128], strides = [1, 1]} : vector<32x2048xf32> to vector<32x128xf32>
    %33 = arith.maximumf %31, %32 : vector<32x128xf32>
    %34 = vector.extract_strided_slice %27 {offsets = [0, 512], sizes = [32, 128], strides = [1, 1]} : vector<32x2048xf32> to vector<32x128xf32>
    %35 = vector.extract_strided_slice %27 {offsets = [0, 640], sizes = [32, 128], strides = [1, 1]} : vector<32x2048xf32> to vector<32x128xf32>
    %36 = arith.maximumf %34, %35 : vector<32x128xf32>
    %37 = vector.extract_strided_slice %27 {offsets = [0, 768], sizes = [32, 128], strides = [1, 1]} : vector<32x2048xf32> to vector<32x128xf32>
    %38 = vector.extract_strided_slice %27 {offsets = [0, 896], sizes = [32, 128], strides = [1, 1]} : vector<32x2048xf32> to vector<32x128xf32>
    %39 = arith.maximumf %37, %38 : vector<32x128xf32>
    %40 = vector.extract_strided_slice %27 {offsets = [0, 1024], sizes = [32, 128], strides = [1, 1]} : vector<32x2048xf32> to vector<32x128xf32>
    %41 = vector.extract_strided_slice %27 {offsets = [0, 1152], sizes = [32, 128], strides = [1, 1]} : vector<32x2048xf32> to vector<32x128xf32>
    %42 = arith.maximumf %40, %41 : vector<32x128xf32>
    %43 = vector.extract_strided_slice %27 {offsets = [0, 1280], sizes = [32, 128], strides = [1, 1]} : vector<32x2048xf32> to vector<32x128xf32>
    %44 = vector.extract_strided_slice %27 {offsets = [0, 1408], sizes = [32, 128], strides = [1, 1]} : vector<32x2048xf32> to vector<32x128xf32>
    %45 = arith.maximumf %43, %44 : vector<32x128xf32>
    %46 = vector.extract_strided_slice %27 {offsets = [0, 1536], sizes = [32, 128], strides = [1, 1]} : vector<32x2048xf32> to vector<32x128xf32>
    %47 = vector.extract_strided_slice %27 {offsets = [0, 1664], sizes = [32, 128], strides = [1, 1]} : vector<32x2048xf32> to vector<32x128xf32>
    %48 = arith.maximumf %46, %47 : vector<32x128xf32>
    %49 = vector.extract_strided_slice %27 {offsets = [0, 1792], sizes = [32, 128], strides = [1, 1]} : vector<32x2048xf32> to vector<32x128xf32>
    %50 = vector.extract_strided_slice %27 {offsets = [0, 1920], sizes = [32, 128], strides = [1, 1]} : vector<32x2048xf32> to vector<32x128xf32>
    %51 = arith.maximumf %49, %50 : vector<32x128xf32>
    %52 = tpu.concatenate %30, %33, %36, %39, %42, %45, %48, %51 in 0 : vector<32x128xf32>, vector<32x128xf32>, vector<32x128xf32>, vector<32x128xf32>, vector<32x128xf32>, vector<32x128xf32>, vector<32x128xf32>, vector<32x128xf32> -> vector<256x128xf32>
    %c0_15 = arith.constant 0 : index
    %c0_16 = arith.constant 0 : index
    %53 = vector.load %arg6[%c0_15, %c0_16] : memref<32x256xf32, #tpu.memory_space<vmem>>, vector<32x256xf32>
    %cst_17 = arith.constant dense<0.000000e+00> : vector<32x128xf32>
    %54 = tpu.matmul %53, %52, %cst_17 {dimension_numbers = #tpu.dot_dimension_numbers<[1], [0], [0], [1], [0, 0, 1, 1], [], []>} : vector<32x256xf32>, vector<256x128xf32>, vector<32x128xf32> -> vector<32x128xf32>
    %c0_18 = arith.constant 0 : index
    %c0_19 = arith.constant 0 : index
    %55 = vector.load %arg7[%c0_18, %c0_19] : memref<32x1xf32, #tpu.memory_space<vmem>>, vector<32x1xf32>
    %56 = vector.broadcast %55 : vector<32x1xf32> to vector<32x128xf32>
    %57 = arith.addf %54, %56 : vector<32x128xf32>
    %cst_20 = arith.constant 0.000000e+00 : f32
    %58 = vector.broadcast %cst_20 : f32 to vector<32x128xf32>
    %59 = arith.maximumf %57, %58 : vector<32x128xf32>
    %c0_21 = arith.constant 0 : index
    %c0_22 = arith.constant 0 : index
    %60 = vector.load %arg8[%c0_21, %c0_22] : memref<32x32xf32, #tpu.memory_space<vmem>>, vector<32x32xf32>
    %cst_23 = arith.constant dense<0.000000e+00> : vector<32x128xf32>
    %61 = tpu.matmul %60, %59, %cst_23 {dimension_numbers = #tpu.dot_dimension_numbers<[1], [0], [0], [1], [0, 0, 1, 1], [], []>} : vector<32x32xf32>, vector<32x128xf32>, vector<32x128xf32> -> vector<32x128xf32>
    %c0_24 = arith.constant 0 : index
    %c0_25 = arith.constant 0 : index
    %62 = vector.load %arg9[%c0_24, %c0_25] : memref<32x1xf32, #tpu.memory_space<vmem>>, vector<32x1xf32>
    %63 = vector.broadcast %62 : vector<32x1xf32> to vector<32x128xf32>
    %64 = arith.addf %61, %63 : vector<32x128xf32>
    %cst_26 = arith.constant 0.000000e+00 : f32
    %65 = vector.broadcast %cst_26 : f32 to vector<32x128xf32>
    %66 = arith.maximumf %64, %65 : vector<32x128xf32>
    %c0_27 = arith.constant 0 : index
    %c0_28 = arith.constant 0 : index
    %67 = vector.load %arg10[%c0_27, %c0_28] : memref<32x32xf32, #tpu.memory_space<vmem>>, vector<32x32xf32>
    %cst_29 = arith.constant dense<0.000000e+00> : vector<32x128xf32>
    %68 = tpu.matmul %67, %66, %cst_29 {dimension_numbers = #tpu.dot_dimension_numbers<[1], [0], [0], [1], [0, 0, 1, 1], [], []>} : vector<32x32xf32>, vector<32x128xf32>, vector<32x128xf32> -> vector<32x128xf32>
    %c0_30 = arith.constant 0 : index
    %c0_31 = arith.constant 0 : index
    %69 = vector.load %arg11[%c0_30, %c0_31] : memref<32x1xf32, #tpu.memory_space<vmem>>, vector<32x1xf32>
    %70 = vector.broadcast %69 : vector<32x1xf32> to vector<32x128xf32>
    %71 = arith.addf %68, %70 : vector<32x128xf32>
    %cst_32 = arith.constant 0.000000e+00 : f32
    %72 = vector.broadcast %cst_32 : f32 to vector<32x128xf32>
    %73 = arith.maximumf %71, %72 : vector<32x128xf32>
    %c0_33 = arith.constant 0 : index
    %c0_34 = arith.constant 0 : index
    %74 = vector.load %arg12[%c0_33, %c0_34] : memref<8x32xf32, #tpu.memory_space<vmem>>, vector<8x32xf32>
    %cst_35 = arith.constant dense<0.000000e+00> : vector<8x128xf32>
    %75 = tpu.matmul %74, %73, %cst_35 {dimension_numbers = #tpu.dot_dimension_numbers<[1], [0], [0], [1], [0, 0, 1, 1], [], []>} : vector<8x32xf32>, vector<32x128xf32>, vector<8x128xf32> -> vector<8x128xf32>
    %c0_36 = arith.constant 0 : index
    %c0_37 = arith.constant 0 : index
    %76 = vector.load %arg13[%c0_36, %c0_37] : memref<8x1xf32, #tpu.memory_space<vmem>>, vector<8x1xf32>
    %77 = vector.broadcast %76 : vector<8x1xf32> to vector<8x128xf32>
    %78 = arith.addf %75, %77 : vector<8x128xf32>
    %c0_38 = arith.constant 0 : index
    %c0_39 = arith.constant 0 : index
    %79 = vector.load %arg14[%c0_38, %c0_39] : memref<8x128xf32, #tpu.memory_space<vmem>>, vector<8x128xf32>
    tpu.vector_store %arg14[%c0_38, %c0_39], %78 {strides = array<i32>} : memref<8x128xf32, #tpu.memory_space<vmem>>, vector<8x128xf32>,
    return
  }
  func.func @transform_0(%arg0: i32) -> (i32, i32, i32) {
    %c0_i32 = arith.constant 0 : i32
    %c0_i32_0 = arith.constant 0 : i32
    %c0_i32_1 = arith.constant 0 : i32
    return %arg0, %c0_i32, %c0_i32_0 : i32, i32, i32
  }
  func.func @transform_1(%arg0: i32) -> (i32, i32) {
    %c0_i32 = arith.constant 0 : i32
    %c0_i32_0 = arith.constant 0 : i32
    %c0_i32_1 = arith.constant 0 : i32
    return %c0_i32, %c0_i32_0 : i32, i32
  }
  func.func @transform_2(%arg0: i32) -> (i32, i32) {
    %c0_i32 = arith.constant 0 : i32
    %c0_i32_0 = arith.constant 0 : i32
    %c0_i32_1 = arith.constant 0 : i32
    return %c0_i32, %c0_i32_0 : i32, i32
  }
  func.func @transform_3(%arg0: i32) -> (i32, i32) {
    %c0_i32 = arith.constant 0 : i32
    %c0_i32_0 = arith.constant 0 : i32
    %c0_i32_1 = arith.constant 0 : i32
    return %c0_i32, %c0_i32_0 : i32, i32
  }
  func.func @transform_4(%arg0: i32) -> (i32, i32) {
    %c0_i32 = arith.constant 0 : i32
    %c0_i32_0 = arith.constant 0 : i32
    %c0_i32_1 = arith.constant 0 : i32
    return %c0_i32, %c0_i32_0 : i32, i32
  }
  func.func @transform_5(%arg0: i32) -> (i32, i32) {
    %c0_i32 = arith.constant 0 : i32
    %c0_i32_0 = arith.constant 0 : i32
    %c0_i32_1 = arith.constant 0 : i32
    return %c0_i32, %c0_i32_0 : i32, i32
  }
  func.func @transform_6(%arg0: i32) -> (i32, i32) {
    %c0_i32 = arith.constant 0 : i32
    %c0_i32_0 = arith.constant 0 : i32
    %c0_i32_1 = arith.constant 0 : i32
    return %c0_i32, %c0_i32_0 : i32, i32
  }
  func.func @transform_7(%arg0: i32) -> (i32, i32) {
    %c0_i32 = arith.constant 0 : i32
    %c0_i32_0 = arith.constant 0 : i32
    %c0_i32_1 = arith.constant 0 : i32
    return %c0_i32, %c0_i32_0 : i32, i32
  }
  func.func @transform_8(%arg0: i32) -> (i32, i32) {
    %c0_i32 = arith.constant 0 : i32
    %c0_i32_0 = arith.constant 0 : i32
    %c0_i32_1 = arith.constant 0 : i32
    return %c0_i32, %c0_i32_0 : i32, i32
  }
  func.func @transform_9(%arg0: i32) -> (i32, i32) {
    %c0_i32 = arith.constant 0 : i32
    %c0_i32_0 = arith.constant 0 : i32
    %c0_i32_1 = arith.constant 0 : i32
    return %c0_i32, %c0_i32_0 : i32, i32
  }
  func.func @transform_10(%arg0: i32) -> (i32, i32) {
    %c0_i32 = arith.constant 0 : i32
    %c0_i32_0 = arith.constant 0 : i32
    %c0_i32_1 = arith.constant 0 : i32
    return %c0_i32, %c0_i32_0 : i32, i32
  }
  func.func @transform_11(%arg0: i32) -> (i32, i32) {
    %c0_i32 = arith.constant 0 : i32
    %c0_i32_0 = arith.constant 0 : i32
    %c0_i32_1 = arith.constant 0 : i32
    return %c0_i32, %c0_i32_0 : i32, i32
  }
  func.func @transform_12(%arg0: i32) -> (i32, i32) {
    %c0_i32 = arith.constant 0 : i32
    %c0_i32_0 = arith.constant 0 : i32
    %c0_i32_1 = arith.constant 0 : i32
    return %c0_i32, %c0_i32_0 : i32, i32
  }
  func.func @transform_13(%arg0: i32) -> (i32, i32) {
    %c0_i32 = arith.constant 0 : i32
    %c0_i32_0 = arith.constant 0 : i32
    return %c0_i32, %arg0 : i32, i32
  }
}

</mosaic_0001>

<llo_original>
// kernel: dqn_cnn_forward.1
$region0: #{dqn_cnn_forward.1}
  #allocation0 [shape = 'u32[]', space=smem, size = 0x4, offset = 0x4, fixed_abs, tag = 'smem constant byte address 0x4 - core index']
  #allocation1 [shape = 'u32[144,128]{1,0:T(1,128)}', space=vmem, size = 0x12000, scoped, tag = 'internal scratch']
  %s0 = inlined_call_operand.vmem [shape: f32[1,1,2048], index: 0, kind: input, shape index: {}]
  %s1 = inlined_call_operand.vmem [shape: f32[16,3], index: 1, kind: input, shape index: {}]
  %s2 = inlined_call_operand.vmem [shape: f32[16,1], index: 2, kind: input, shape index: {}]
  %s3 = inlined_call_operand.vmem [shape: f32[32,48], index: 3, kind: input, shape index: {}]
  %s4 = inlined_call_operand.vmem [shape: f32[32,1], index: 4, kind: input, shape index: {}]
  %s5 = inlined_call_operand.vmem [shape: f32[32,256], index: 5, kind: input, shape index: {}]
  %s6 = inlined_call_operand.vmem [shape: f32[32,1], index: 6, kind: input, shape index: {}]
  %s7 = inlined_call_operand.vmem [shape: f32[32,32], index: 7, kind: input, shape index: {}]
  %s8 = inlined_call_operand.vmem [shape: f32[32,1], index: 8, kind: input, shape index: {}]
  %s9 = inlined_call_operand.vmem [shape: f32[32,32], index: 9, kind: input, shape index: {}]
  %s10 = inlined_call_operand.vmem [shape: f32[32,1], index: 10, kind: input, shape index: {}]
  %s11 = inlined_call_operand.vmem [shape: f32[8,32], index: 11, kind: input, shape index: {}]
  %s12 = inlined_call_operand.vmem [shape: f32[8,1], index: 12, kind: input, shape index: {}]
  %s13 = inlined_call_operand.vmem [shape: f32[8,128], index: 13, kind: output, shape index: {}]
  %s14 = sld [smem:[#allocation0]]
  $region62: #{dqn_cnn_forward.1} parent=0
    _
  %s16 = ssub.s32 1, %s14
  %s17 = scalar_select 0, %s16, %s14
  // Predicated region
  $region2: #{dqn_cnn_forward.1} parent=0 // pred_check
    _
  $region3: #{dqn_cnn_forward.1} parent=0 // pred_check_branch
    %19 = sbr.rel (0) target = $region5
  $region4: #{dqn_cnn_forward.1} parent=0 // pred_region
    _
  $region5: #{dqn_cnn_forward.1} parent=0 // pred_fallthru
    _
  // Predicated region
  $region6: #{dqn_cnn_forward.1} parent=0 // pred_check
    _
  $region7: #{dqn_cnn_forward.1} parent=0 // pred_check_branch
    %21 = sbr.rel (0) target = $region9
  $region8: #{dqn_cnn_forward.1} parent=0 // pred_region
    _
  $region9: #{dqn_cnn_forward.1} parent=0 // pred_fallthru
    _
  // Predicated region
  $region10: #{dqn_cnn_forward.1} parent=0 // pred_check
    _
  $region11: #{dqn_cnn_forward.1} parent=0 // pred_check_branch
    %23 = sbr.rel (0) target = $region13
  $region12: #{dqn_cnn_forward.1} parent=0 // pred_region
    _
  $region13: #{dqn_cnn_forward.1} parent=0 // pred_fallthru
    _
  // Predicated region
  $region14: #{dqn_cnn_forward.1} parent=0 // pred_check
    _
  $region15: #{dqn_cnn_forward.1} parent=0 // pred_check_branch
    %25 = sbr.rel (0) target = $region17
  $region16: #{dqn_cnn_forward.1} parent=0 // pred_region
    _
  $region17: #{dqn_cnn_forward.1} parent=0 // pred_fallthru
    _
  // Predicated region
  $region18: #{dqn_cnn_forward.1} parent=0 // pred_check
    _
  $region19: #{dqn_cnn_forward.1} parent=0 // pred_check_branch
    %27 = sbr.rel (0) target = $region21
  $region20: #{dqn_cnn_forward.1} parent=0 // pred_region
    _
  $region21: #{dqn_cnn_forward.1} parent=0 // pred_fallthru
    _
  // Predicated region
  $region22: #{dqn_cnn_forward.1} parent=0 // pred_check
    _
  $region23: #{dqn_cnn_forward.1} parent=0 // pred_check_branch
    %29 = sbr.rel (0) target = $region25
  $region24: #{dqn_cnn_forward.1} parent=0 // pred_region
    _
  $region25: #{dqn_cnn_forward.1} parent=0 // pred_fallthru
    _
  // Predicated region
  $region26: #{dqn_cnn_forward.1} parent=0 // pred_check
    _
  $region27: #{dqn_cnn_forward.1} parent=0 // pred_check_branch
    %31 = sbr.rel (0) target = $region29
  $region28: #{dqn_cnn_forward.1} parent=0 // pred_region
    _
  $region29: #{dqn_cnn_forward.1} parent=0 // pred_fallthru
    _
  // Predicated region
  $region30: #{dqn_cnn_forward.1} parent=0 // pred_check
    _
  $region31: #{dqn_cnn_forward.1} parent=0 // pred_check_branch
    %33 = sbr.rel (0) target = $region33
  $region32: #{dqn_cnn_forward.1} parent=0 // pred_region
    _
  $region33: #{dqn_cnn_forward.1} parent=0 // pred_fallthru
    _
  // Predicated region
  $region34: #{dqn_cnn_forward.1} parent=0 // pred_check
    _
  $region35: #{dqn_cnn_forward.1} parent=0 // pred_check_branch
    %35 = sbr.rel (0) target = $region37
  $region36: #{dqn_cnn_forward.1} parent=0 // pred_region
    _
  $region37: #{dqn_cnn_forward.1} parent=0 // pred_fallthru
    _
  // Predicated region
  $region38: #{dqn_cnn_forward.1} parent=0 // pred_check
    _
  $region39: #{dqn_cnn_forward.1} parent=0 // pred_check_branch
    %37 = sbr.rel (0) target = $region41
  $region40: #{dqn_cnn_forward.1} parent=0 // pred_region
    _
  $region41: #{dqn_cnn_forward.1} parent=0 // pred_fallthru
    _
  // Predicated region
  $region42: #{dqn_cnn_forward.1} parent=0 // pred_check
    _
  $region43: #{dqn_cnn_forward.1} parent=0 // pred_check_branch
    %39 = sbr.rel (0) target = $region45
  $region44: #{dqn_cnn_forward.1} parent=0 // pred_region
    _
  $region45: #{dqn_cnn_forward.1} parent=0 // pred_fallthru
    _
  // Predicated region
  $region46: #{dqn_cnn_forward.1} parent=0 // pred_check
    _
  $region47: #{dqn_cnn_forward.1} parent=0 // pred_check_branch
    %41 = sbr.rel (0) target = $region49
  $region48: #{dqn_cnn_forward.1} parent=0 // pred_region
    _
  $region49: #{dqn_cnn_forward.1} parent=0 // pred_fallthru
    _
  // Predicated region
  $region50: #{dqn_cnn_forward.1} parent=0 // pred_check
    _
  $region51: #{dqn_cnn_forward.1} parent=0 // pred_check_branch
    %43 = sbr.rel (0) target = $region53
  $region52: #{dqn_cnn_forward.1} parent=0 // pred_region
    _
  $region53: #{dqn_cnn_forward.1} parent=0 // pred_fallthru
    _
  %v44 = vld [vmem:[%s0] sm:$0xff]
  %v45 = vld [vmem:[%s0 + $0x8] sm:$0xff]
  %v48 = vlaneseq
  %v49 = vshrl.u32 %v48, 7
  %v50 = vsub.s32 0, %v49
  %v51 = vrot.slane %v44, %v50
  %v52 = vlaneseq
  %v53 = vshrl.u32 %v52, 7
  %v54 = vsub.s32 1, %v53
  %v55 = vrot.slane %v44, %v54
  %v56 = vlaneseq
  %v57 = vshrl.u32 %v56, 7
  %v58 = vsub.s32 2, %v57
  %v59 = vrot.slane %v44, %v58
  %v60 = vlaneseq
  %v61 = vshrl.u32 %v60, 7
  %v62 = vsub.s32 3, %v61
  %v63 = vrot.slane %v44, %v62
  %v64 = vlaneseq
  %v65 = vshrl.u32 %v64, 7
  %v66 = vsub.s32 4, %v65
  %v67 = vrot.slane %v44, %v66
  %v68 = vlaneseq
  %v69 = vshrl.u32 %v68, 7
  %v70 = vsub.s32 5, %v69
  %v71 = vrot.slane %v44, %v70
  %v72 = vlaneseq
  %v73 = vshrl.u32 %v72, 7
  %v74 = vsub.s32 6, %v73
  %v75 = vrot.slane %v44, %v74
  %v76 = vlaneseq
  %v77 = vshrl.u32 %v76, 7
  %v78 = vsub.s32 7, %v77
  %v79 = vrot.slane %v44, %v78
  %v80 = vlaneseq
  %v81 = vshrl.u32 %v80, 7
  %v82 = vsub.s32 0, %v81
  %v83 = vrot.slane %v45, %v82
  %v84 = vlaneseq
  %v85 = vshrl.u32 %v84, 7
  %v86 = vsub.s32 1, %v85
  %v87 = vrot.slane %v45, %v86
  %v88 = vlaneseq
  %v89 = vshrl.u32 %v88, 7
  %v90 = vsub.s32 2, %v89
  %v91 = vrot.slane %v45, %v90
  %v92 = vlaneseq
  %v93 = vshrl.u32 %v92, 7
  %v94 = vsub.s32 3, %v93
  %v95 = vrot.slane %v45, %v94
  %v96 = vlaneseq
  %v97 = vshrl.u32 %v96, 7
  %v98 = vsub.s32 4, %v97
  %v99 = vrot.slane %v45, %v98
  %v100 = vlaneseq
  %v101 = vshrl.u32 %v100, 7
  %v102 = vsub.s32 5, %v101
  %v103 = vrot.slane %v45, %v102
  %v104 = vlaneseq
  %v105 = vshrl.u32 %v104, 7
  %v106 = vsub.s32 6, %v105
  %v107 = vrot.slane %v45, %v106
  %v123 = vlaneseq
  %v124 = vshrl.u32 %v123, 7
  %v125 = vsub.s32 7, %v124
  %v126 = vrot.slane %v45, %v125
  %v129 = vrot.slane %v55, 6
  %v130 = vrot.slane %v59, 6
  %v131 = vrot.slane %v63, 6
  %v132 = vrot.slane %v67, 6
  %v133 = vrot.slane %v71, 6
  %v134 = vrot.slane %v75, 6
  %v135 = vrot.slane %v79, 6
  %v136 = vrot.slane %v83, 6
  %v137 = vrot.slane %v87, 6
  %v138 = vrot.slane %v91, 6
  %v139 = vrot.slane %v95, 6
  %v140 = vrot.slane %v99, 6
  %v141 = vrot.slane %v103, 6
  %v142 = vrot.slane %v107, 6
  %v143 = vrot.slane %v126, 6
  %v144 = vrot.slane 0.0, 6
  %vm161 = vcmask 1040384
  %v162 = vsel %vm161, 0.0, %v51
  %v163 = vsel %vm161, %v51, %v55
  %v164 = vsel %vm161, %v55, %v59
  %v165 = vsel %vm161, %v59, %v63
  %v166 = vsel %vm161, %v63, %v67
  %v167 = vsel %vm161, %v67, %v71
  %v168 = vsel %vm161, %v71, %v75
  %v169 = vsel %vm161, %v75, %v79
  %v170 = vsel %vm161, %v79, %v83
  %v171 = vsel %vm161, %v83, %v87
  %v172 = vsel %vm161, %v87, %v91
  %v173 = vsel %vm161, %v91, %v95
  %v174 = vsel %vm161, %v95, %v99
  %v175 = vsel %vm161, %v99, %v103
  %v176 = vsel %vm161, %v103, %v107
  %v177 = vsel %vm161, %v107, %v126
  %vm178 = vcmask 1041408
  %v179 = vsel %vm178, %v162, %v129
  %v180 = vsel %vm178, %v163, %v130
  %v181 = vsel %vm178, %v164, %v131
  %v182 = vsel %vm178, %v165, %v132
  %v183 = vsel %vm178, %v166, %v133
  %v184 = vsel %vm178, %v167, %v134
  %v185 = vsel %vm178, %v168, %v135
  %v186 = vsel %vm178, %v169, %v136
  %v187 = vsel %vm178, %v170, %v137
  %v188 = vsel %vm178, %v171, %v138
  %v189 = vsel %vm178, %v172, %v139
  %v190 = vsel %vm178, %v173, %v140
  %v191 = vsel %vm178, %v174, %v141
  %v192 = vsel %vm178, %v175, %v142
  %v193 = vsel %vm178, %v176, %v143
  %v194 = vsel %vm178, %v177, %v144
  %v195 = vld [vmem:[%s1] sm:$0xff]
  %v196 = vld [vmem:[%s1 + $0x8] sm:$0xff]
  %v197 = vld [vmem:[%s2] sm:$0xff]
  %v198 = vld [vmem:[%s2 + $0x8] sm:$0xff]
  %200 = vset.pattern.permute.xlu0 0
  %201 = vperm.xlu0 %200, %v197
  %v202 = vpop.permute.xlu0 %201
  %205 = vset.pattern.permute.xlu0 0
  %206 = vperm.xlu0 %205, %v198
  %v207 = vpop.permute.xlu0 %206
  %vm209 = vcmask 23552
  %v211 = vsel %vm209, %v195, 0
  %v214 = vsel %vm209, %v196, 0
  %vm216 = vcmask 1042432
  %v218 = vsel %vm216, %v179, 0
  %v221 = vsel %vm216, %v180, 0
  %v224 = vsel %vm216, %v181, 0
  %v227 = vsel %vm216, %v182, 0
  %v230 = vsel %vm216, %v183, 0
  %v233 = vsel %vm216, %v184, 0
  %v236 = vsel %vm216, %v185, 0
  %v239 = vsel %vm216, %v186, 0
  %v242 = vsel %vm216, %v187, 0
  %v245 = vsel %vm216, %v188, 0
  %v248 = vsel %vm216, %v189, 0
  %v251 = vsel %vm216, %v190, 0
  %v254 = vsel %vm216, %v191, 0
  %v257 = vsel %vm216, %v192, 0
  %v260 = vsel %vm216, %v193, 0
  %v263 = vsel %vm216, %v194, 0
  %265 = vmatprep.subr.mxu0 0.0
  %266 = vmatpush1.msra.mxu0 0.0
  %267 = vmatprep.subr.mxu0 0.0
  %268 = vmatpush1.msra.mxu0 0.0
  %269 = vmatprep.subr.mxu0 0.0
  %270 = vmatpush1.msra.mxu0 0.0
  %271 = vmatprep.subr.mxu0 0.0
  %272 = vmatpush1.msra.mxu0 0.0
  %273 = vmatprep.subr.mxu0 0.0
  %274 = vmatpush1.msra.mxu0 0.0
  %275 = vmatprep.subr.mxu0 0.0
  %276 = vmatpush1.msra.mxu0 0.0
  %277 = vmatprep.subr.mxu0 0.0
  %278 = vmatpush1.msra.mxu0 0.0
  %279 = vmatprep.subr.mxu0 0.0
  %280 = vmatpush1.msra.mxu0 0.0
  %281 = vmatprep.subr.mxu0 0.0
  %282 = vmatpush1.msra.mxu0 0.0
  %283 = vmatprep.subr.mxu0 0.0
  %284 = vmatpush1.msra.mxu0 0.0
  %285 = vmatprep.subr.mxu0 0.0
  %286 = vmatpush1.msra.mxu0 0.0
  %287 = vmatprep.subr.mxu0 0.0
  %288 = vmatpush1.msra.mxu0 0.0
  %289 = vmatprep.subr.mxu0 0.0
  %290 = vmatpush1.msra.mxu0 0.0
  %291 = vmatprep.subr.mxu0 0.0
  %292 = vmatpush1.msra.mxu0 0.0
  %293 = vmatprep.subr.mxu0 0.0
  %294 = vmatpush1.msra.mxu0 0.0
  %295 = vmatprep.subr.mxu0 %v221
  %296 = vmatpush1.msra.mxu0 %v218
  %297 = vmatprep.subr.mxu0 0.0
  %298 = vmatpush2.msra.mxu0 0.0
  %299 = vmatprep.subr.mxu0 0.0
  %300 = vmatpush2.msra.mxu0 0.0
  %301 = vmatprep.subr.mxu0 0.0
  %302 = vmatpush2.msra.mxu0 0.0
  %303 = vmatprep.subr.mxu0 0.0
  %304 = vmatpush2.msra.mxu0 0.0
  %305 = vmatprep.subr.mxu0 0.0
  %306 = vmatpush2.msra.mxu0 0.0
  %307 = vmatprep.subr.mxu0 0.0
  %308 = vmatpush2.msra.mxu0 0.0
  %309 = vmatprep.subr.mxu0 0.0
  %310 = vmatpush2.msra.mxu0 0.0
  %311 = vmatprep.subr.mxu0 0.0
  %312 = vmatpush2.msra.mxu0 0.0
  %313 = vmatprep.subr.mxu0 0.0
  %314 = vmatpush2.msra.mxu0 0.0
  %315 = vmatprep.subr.mxu0 0.0
  %316 = vmatpush2.msra.mxu0 0.0
  %317 = vmatprep.subr.mxu0 0.0
  %318 = vmatpush2.msra.mxu0 0.0
  %319 = vmatprep.subr.mxu0 0.0
  %320 = vmatpush2.msra.mxu0 0.0
  %321 = vmatprep.subr.mxu0 0.0
  %322 = vmatpush2.msra.mxu0 0.0
  %323 = vmatprep.subr.mxu0 0.0
  %324 = vmatpush2.msra.mxu0 0.0
  %325 = vmatprep.subr.mxu0 0.0
  %326 = vmatpush2.msra.mxu0 0.0
  %327 = vmatprep.subr.mxu0 0.0
  %328 = vmatpush2.msra.mxu0 0.0
  %329 = vmatprep.mubr.f32.mxu0 0.0
  %330 = vmatmul.mubr.f32.gmra.mxu0 %v211
  %v331 = vpop.f32.mrf.mxu0
  %v332 = vadd.f32 %v202, %v331
  %v333 = vpop.f32.mrf.mxu0
  %v334 = vadd.f32 %v202, %v333
  %335 = vmatprep.mubr.f32.mxu0 0.0
  %336 = vmatmul.mubr.f32.gmra.mxu0 %v214
  %v337 = vpop.f32.mrf.mxu0
  %v338 = vadd.f32 %v207, %v337
  %v339 = vpop.f32.mrf.mxu0
  %v340 = vadd.f32 %v207, %v339
  %341 = vdwg.mxu0
  %342 = vmatprep.subr.mxu0 0.0
  %343 = vmatpush1.msra.mxu0 0.0
  %344 = vmatprep.subr.mxu0 0.0
  %345 = vmatpush1.msra.mxu0 0.0
  %346 = vmatprep.subr.mxu0 0.0
  %347 = vmatpush1.msra.mxu0 0.0
  %348 = vmatprep.subr.mxu0 0.0
  %349 = vmatpush1.msra.mxu0 0.0
  %350 = vmatprep.subr.mxu0 0.0
  %351 = vmatpush1.msra.mxu0 0.0
  %352 = vmatprep.subr.mxu0 0.0
  %353 = vmatpush1.msra.mxu0 0.0
  %354 = vmatprep.subr.mxu0 0.0
  %355 = vmatpush1.msra.mxu0 0.0
  %356 = vmatprep.subr.mxu0 0.0
  %357 = vmatpush1.msra.mxu0 0.0
  %358 = vmatprep.subr.mxu0 0.0
  %359 = vmatpush1.msra.mxu0 0.0
  %360 = vmatprep.subr.mxu0 0.0
  %361 = vmatpush1.msra.mxu0 0.0
  %362 = vmatprep.subr.mxu0 0.0
  %363 = vmatpush1.msra.mxu0 0.0
  %364 = vmatprep.subr.mxu0 0.0
  %365 = vmatpush1.msra.mxu0 0.0
  %366 = vmatprep.subr.mxu0 0.0
  %367 = vmatpush1.msra.mxu0 0.0
  %368 = vmatprep.subr.mxu0 0.0
  %369 = vmatpush1.msra.mxu0 0.0
  %370 = vmatprep.subr.mxu0 0.0
  %371 = vmatpush1.msra.mxu0 0.0
  %372 = vmatprep.subr.mxu0 %v227
  %373 = vmatpush1.msra.mxu0 %v224
  %374 = vmatprep.subr.mxu0 0.0
  %375 = vmatpush2.msra.mxu0 0.0
  %376 = vmatprep.subr.mxu0 0.0
  %377 = vmatpush2.msra.mxu0 0.0
  %378 = vmatprep.subr.mxu0 0.0
  %379 = vmatpush2.msra.mxu0 0.0
  %380 = vmatprep.subr.mxu0 0.0
  %381 = vmatpush2.msra.mxu0 0.0
  %382 = vmatprep.subr.mxu0 0.0
  %383 = vmatpush2.msra.mxu0 0.0
  %384 = vmatprep.subr.mxu0 0.0
  %385 = vmatpush2.msra.mxu0 0.0
  %386 = vmatprep.subr.mxu0 0.0
  %387 = vmatpush2.msra.mxu0 0.0
  %388 = vmatprep.subr.mxu0 0.0
  %389 = vmatpush2.msra.mxu0 0.0
  %390 = vmatprep.subr.mxu0 0.0
  %391 = vmatpush2.msra.mxu0 0.0
  %392 = vmatprep.subr.mxu0 0.0
  %393 = vmatpush2.msra.mxu0 0.0
  %394 = vmatprep.subr.mxu0 0.0
  %395 = vmatpush2.msra.mxu0 0.0
  %396 = vmatprep.subr.mxu0 0.0
  %397 = vmatpush2.msra.mxu0 0.0
  %398 = vmatprep.subr.mxu0 0.0
  %399 = vmatpush2.msra.mxu0 0.0
  %400 = vmatprep.subr.mxu0 0.0
  %401 = vmatpush2.msra.mxu0 0.0
  %402 = vmatprep.subr.mxu0 0.0
  %403 = vmatpush2.msra.mxu0 0.0
  %404 = vmatprep.subr.mxu0 0.0
  %405 = vmatpush2.msra.mxu0 0.0
  %406 = vmatprep.mubr.f32.mxu0 0.0
  %407 = vmatmul.mubr.f32.gmra.mxu0 %v211
  %v408 = vpop.f32.mrf.mxu0
  %v409 = vadd.f32 %v202, %v408
  %v410 = vpop.f32.mrf.mxu0
  %v411 = vadd.f32 %v202, %v410
  %412 = vmatprep.mubr.f32.mxu0 0.0
  %413 = vmatmul.mubr.f32.gmra.mxu0 %v214
  %v414 = vpop.f32.mrf.mxu0
  %v415 = vadd.f32 %v207, %v414
  %v416 = vpop.f32.mrf.mxu0
  %v417 = vadd.f32 %v207, %v416
  %418 = vdwg.mxu0
  %419 = vmatprep.subr.mxu0 0.0
  %420 = vmatpush1.msra.mxu0 0.0
  %421 = vmatprep.subr.mxu0 0.0
  %422 = vmatpush1.msra.mxu0 0.0
  %423 = vmatprep.subr.mxu0 0.0
  %424 = vmatpush1.msra.mxu0 0.0
  %425 = vmatprep.subr.mxu0 0.0
  %426 = vmatpush1.msra.mxu0 0.0
  %427 = vmatprep.subr.mxu0 0.0
  %428 = vmatpush1.msra.mxu0 0.0
  %429 = vmatprep.subr.mxu0 0.0
  %430 = vmatpush1.msra.mxu0 0.0
  %431 = vmatprep.subr.mxu0 0.0
  %432 = vmatpush1.msra.mxu0 0.0
  %433 = vmatprep.subr.mxu0 0.0
  %434 = vmatpush1.msra.mxu0 0.0
  %435 = vmatprep.subr.mxu0 0.0
  %436 = vmatpush1.msra.mxu0 0.0
  %437 = vmatprep.subr.mxu0 0.0
  %438 = vmatpush1.msra.mxu0 0.0
  %439 = vmatprep.subr.mxu0 0.0
  %440 = vmatpush1.msra.mxu0 0.0
  %441 = vmatprep.subr.mxu0 0.0
  %442 = vmatpush1.msra.mxu0 0.0
  %443 = vmatprep.subr.mxu0 0.0
  %444 = vmatpush1.msra.mxu0 0.0
  %445 = vmatprep.subr.mxu0 0.0
  %446 = vmatpush1.msra.mxu0 0.0
  %447 = vmatprep.subr.mxu0 0.0
  %448 = vmatpush1.msra.mxu0 0.0
  %449 = vmatprep.subr.mxu0 %v233
  %450 = vmatpush1.msra.mxu0 %v230
  %451 = vmatprep.subr.mxu0 0.0
  %452 = vmatpush2.msra.mxu0 0.0
  %453 = vmatprep.subr.mxu0 0.0
  %454 = vmatpush2.msra.mxu0 0.0
  %455 = vmatprep.subr.mxu0 0.0
  %456 = vmatpush2.msra.mxu0 0.0
  %457 = vmatprep.subr.mxu0 0.0
  %458 = vmatpush2.msra.mxu0 0.0
  %459 = vmatprep.subr.mxu0 0.0
  %460 = vmatpush2.msra.mxu0 0.0
  %461 = vmatprep.subr.mxu0 0.0
  %462 = vmatpush2.msra.mxu0 0.0
  %463 = vmatprep.subr.mxu0 0.0
  %464 = vmatpush2.msra.mxu0 0.0
  %465 = vmatprep.subr.mxu0 0.0
  %466 = vmatpush2.msra.mxu0 0.0
  %467 = vmatprep.subr.mxu0 0.0
  %468 = vmatpush2.msra.mxu0 0.0
  %469 = vmatprep.subr.mxu0 0.0
  %470 = vmatpush2.msra.mxu0 0.0
  %471 = vmatprep.subr.mxu0 0.0
  %472 = vmatpush2.msra.mxu0 0.0
  %473 = vmatprep.subr.mxu0 0.0
  %474 = vmatpush2.msra.mxu0 0.0
  %475 = vmatprep.subr.mxu0 0.0
  %476 = vmatpush2.msra.mxu0 0.0
  %477 = vmatprep.subr.mxu0 0.0
  %478 = vmatpush2.msra.mxu0 0.0
  %479 = vmatprep.subr.mxu0 0.0
  %480 = vmatpush2.msra.mxu0 0.0
  %481 = vmatprep.subr.mxu0 0.0
  %482 = vmatpush2.msra.mxu0 0.0
  %483 = vmatprep.mubr.f32.mxu0 0.0
  %484 = vmatmul.mubr.f32.gmra.mxu0 %v211
  %v485 = vpop.f32.mrf.mxu0
  %v486 = vadd.f32 %v202, %v485
  %v487 = vpop.f32.mrf.mxu0
  %v488 = vadd.f32 %v202, %v487
  %489 = vmatprep.mubr.f32.mxu0 0.0
  %490 = vmatmul.mubr.f32.gmra.mxu0 %v214
  %v491 = vpop.f32.mrf.mxu0
  %v492 = vadd.f32 %v207, %v491
  %v493 = vpop.f32.mrf.mxu0
  %v494 = vadd.f32 %v207, %v493
  %495 = vdwg.mxu0
  %496 = vmatprep.subr.mxu0 0.0
  %497 = vmatpush1.msra.mxu0 0.0
  %498 = vmatprep.subr.mxu0 0.0
  %499 = vmatpush1.msra.mxu0 0.0
  %500 = vmatprep.subr.mxu0 0.0
  %501 = vmatpush1.msra.mxu0 0.0
  %502 = vmatprep.subr.mxu0 0.0
  %503 = vmatpush1.msra.mxu0 0.0
  %504 = vmatprep.subr.mxu0 0.0
  %505 = vmatpush1.msra.mxu0 0.0
  %506 = vmatprep.subr.mxu0 0.0
  %507 = vmatpush1.msra.mxu0 0.0
  %508 = vmatprep.subr.mxu0 0.0
  %509 = vmatpush1.msra.mxu0 0.0
  %510 = vmatprep.subr.mxu0 0.0
  %511 = vmatpush1.msra.mxu0 0.0
  %512 = vmatprep.subr.mxu0 0.0
  %513 = vmatpush1.msra.mxu0 0.0
  %514 = vmatprep.subr.mxu0 0.0
  %515 = vmatpush1.msra.mxu0 0.0
  %516 = vmatprep.subr.mxu0 0.0
  %517 = vmatpush1.msra.mxu0 0.0
  %518 = vmatprep.subr.mxu0 0.0
  %519 = vmatpush1.msra.mxu0 0.0
  %520 = vmatprep.subr.mxu0 0.0
  %521 = vmatpush1.msra.mxu0 0.0
  %522 = vmatprep.subr.mxu0 0.0
  %523 = vmatpush1.msra.mxu0 0.0
  %524 = vmatprep.subr.mxu0 0.0
  %525 = vmatpush1.msra.mxu0 0.0
  %526 = vmatprep.subr.mxu0 %v239
  %527 = vmatpush1.msra.mxu0 %v236
  %528 = vmatprep.subr.mxu0 0.0
  %529 = vmatpush2.msra.mxu0 0.0
  %530 = vmatprep.subr.mxu0 0.0
  %531 = vmatpush2.msra.mxu0 0.0
  %532 = vmatprep.subr.mxu0 0.0
  %533 = vmatpush2.msra.mxu0 0.0
  %534 = vmatprep.subr.mxu0 0.0
  %535 = vmatpush2.msra.mxu0 0.0
  %536 = vmatprep.subr.mxu0 0.0
  %537 = vmatpush2.msra.mxu0 0.0
  %538 = vmatprep.subr.mxu0 0.0
  %539 = vmatpush2.msra.mxu0 0.0
  %540 = vmatprep.subr.mxu0 0.0
  %541 = vmatpush2.msra.mxu0 0.0
  %542 = vmatprep.subr.mxu0 0.0
  %543 = vmatpush2.msra.mxu0 0.0
  %544 = vmatprep.subr.mxu0 0.0
  %545 = vmatpush2.msra.mxu0 0.0
  %546 = vmatprep.subr.mxu0 0.0
  %547 = vmatpush2.msra.mxu0 0.0
  %548 = vmatprep.subr.mxu0 0.0
  %549 = vmatpush2.msra.mxu0 0.0
  %550 = vmatprep.subr.mxu0 0.0
  %551 = vmatpush2.msra.mxu0 0.0
  %552 = vmatprep.subr.mxu0 0.0
  %553 = vmatpush2.msra.mxu0 0.0
  %554 = vmatprep.subr.mxu0 0.0
  %555 = vmatpush2.msra.mxu0 0.0
  %556 = vmatprep.subr.mxu0 0.0
  %557 = vmatpush2.msra.mxu0 0.0
  %558 = vmatprep.subr.mxu0 0.0
  %559 = vmatpush2.msra.mxu0 0.0
  %560 = vmatprep.mubr.f32.mxu0 0.0
  %561 = vmatmul.mubr.f32.gmra.mxu0 %v211
  %v562 = vpop.f32.mrf.mxu0
  %v563 = vadd.f32 %v202, %v562
  %v564 = vpop.f32.mrf.mxu0
  %v565 = vadd.f32 %v202, %v564
  %566 = vmatprep.mubr.f32.mxu0 0.0
  %567 = vmatmul.mubr.f32.gmra.mxu0 %v214
  %v568 = vpop.f32.mrf.mxu0
  %v569 = vadd.f32 %v207, %v568
  %v570 = vpop.f32.mrf.mxu0
  %v571 = vadd.f32 %v207, %v570
  %572 = vdwg.mxu0
  %573 = vmatprep.subr.mxu0 0.0
  %574 = vmatpush1.msra.mxu0 0.0
  %575 = vmatprep.subr.mxu0 0.0
  %576 = vmatpush1.msra.mxu0 0.0
  %577 = vmatprep.subr.mxu0 0.0
  %578 = vmatpush1.msra.mxu0 0.0
  %579 = vmatprep.subr.mxu0 0.0
  %580 = vmatpush1.msra.mxu0 0.0
  %581 = vmatprep.subr.mxu0 0.0
  %582 = vmatpush1.msra.mxu0 0.0
  %583 = vmatprep.subr.mxu0 0.0
  %584 = vmatpush1.msra.mxu0 0.0
  %585 = vmatprep.subr.mxu0 0.0
  %586 = vmatpush1.msra.mxu0 0.0
  %587 = vmatprep.subr.mxu0 0.0
  %588 = vmatpush1.msra.mxu0 0.0
  %589 = vmatprep.subr.mxu0 0.0
  %590 = vmatpush1.msra.mxu0 0.0
  %591 = vmatprep.subr.mxu0 0.0
  %592 = vmatpush1.msra.mxu0 0.0
  %593 = vmatprep.subr.mxu0 0.0
  %594 = vmatpush1.msra.mxu0 0.0
  %595 = vmatprep.subr.mxu0 0.0
  %596 = vmatpush1.msra.mxu0 0.0
  %597 = vmatprep.subr.mxu0 0.0
  %598 = vmatpush1.msra.mxu0 0.0
  %599 = vmatprep.subr.mxu0 0.0
  %600 = vmatpush1.msra.mxu0 0.0
  %601 = vmatprep.subr.mxu0 0.0
  %602 = vmatpush1.msra.mxu0 0.0
  %603 = vmatprep.subr.mxu0 %v245
  %604 = vmatpush1.msra.mxu0 %v242
  %605 = vmatprep.subr.mxu0 0.0
  %606 = vmatpush2.msra.mxu0 0.0
  %607 = vmatprep.subr.mxu0 0.0
  %608 = vmatpush2.msra.mxu0 0.0
  %609 = vmatprep.subr.mxu0 0.0
  %610 = vmatpush2.msra.mxu0 0.0
  %611 = vmatprep.subr.mxu0 0.0
  %612 = vmatpush2.msra.mxu0 0.0
  %613 = vmatprep.subr.mxu0 0.0
  %614 = vmatpush2.msra.mxu0 0.0
  %615 = vmatprep.subr.mxu0 0.0
  %616 = vmatpush2.msra.mxu0 0.0
  %617 = vmatprep.subr.mxu0 0.0
  %618 = vmatpush2.msra.mxu0 0.0
  %619 = vmatprep.subr.mxu0 0.0
  %620 = vmatpush2.msra.mxu0 0.0
  %621 = vmatprep.subr.mxu0 0.0
  %622 = vmatpush2.msra.mxu0 0.0
  %623 = vmatprep.subr.mxu0 0.0
  %624 = vmatpush2.msra.mxu0 0.0
  %625 = vmatprep.subr.mxu0 0.0
  %626 = vmatpush2.msra.mxu0 0.0
  %627 = vmatprep.subr.mxu0 0.0
  %628 = vmatpush2.msra.mxu0 0.0
  %629 = vmatprep.subr.mxu0 0.0
  %630 = vmatpush2.msra.mxu0 0.0
  %631 = vmatprep.subr.mxu0 0.0
  %632 = vmatpush2.msra.mxu0 0.0
  %633 = vmatprep.subr.mxu0 0.0
  %634 = vmatpush2.msra.mxu0 0.0
  %635 = vmatprep.subr.mxu0 0.0
  %636 = vmatpush2.msra.mxu0 0.0
  %637 = vmatprep.mubr.f32.mxu0 0.0
  %638 = vmatmul.mubr.f32.gmra.mxu0 %v211
  %v639 = vpop.f32.mrf.mxu0
  %v640 = vadd.f32 %v202, %v639
  %v641 = vpop.f32.mrf.mxu0
  %v642 = vadd.f32 %v202, %v641
  %643 = vmatprep.mubr.f32.mxu0 0.0
  %644 = vmatmul.mubr.f32.gmra.mxu0 %v214
  %v645 = vpop.f32.mrf.mxu0
  %v646 = vadd.f32 %v207, %v645
  %v647 = vpop.f32.mrf.mxu0
  %v648 = vadd.f32 %v207, %v647
  %649 = vdwg.mxu0
  %650 = vmatprep.subr.mxu0 0.0
  %651 = vmatpush1.msra.mxu0 0.0
  %652 = vmatprep.subr.mxu0 0.0
  %653 = vmatpush1.msra.mxu0 0.0
  %654 = vmatprep.subr.mxu0 0.0
  %655 = vmatpush1.msra.mxu0 0.0
  %656 = vmatprep.subr.mxu0 0.0
  %657 = vmatpush1.msra.mxu0 0.0
  %658 = vmatprep.subr.mxu0 0.0
  %659 = vmatpush1.msra.mxu0 0.0
  %660 = vmatprep.subr.mxu0 0.0
  %661 = vmatpush1.msra.mxu0 0.0
  %662 = vmatprep.subr.mxu0 0.0
  %663 = vmatpush1.msra.mxu0 0.0
  %664 = vmatprep.subr.mxu0 0.0
  %665 = vmatpush1.msra.mxu0 0.0
  %666 = vmatprep.subr.mxu0 0.0
  %667 = vmatpush1.msra.mxu0 0.0
  %668 = vmatprep.subr.mxu0 0.0
  %669 = vmatpush1.msra.mxu0 0.0
  %670 = vmatprep.subr.mxu0 0.0
  %671 = vmatpush1.msra.mxu0 0.0
  %672 = vmatprep.subr.mxu0 0.0
  %673 = vmatpush1.msra.mxu0 0.0
  %674 = vmatprep.subr.mxu0 0.0
  %675 = vmatpush1.msra.mxu0 0.0
  %676 = vmatprep.subr.mxu0 0.0
  %677 = vmatpush1.msra.mxu0 0.0
  %678 = vmatprep.subr.mxu0 0.0
  %679 = vmatpush1.msra.mxu0 0.0
  %680 = vmatprep.subr.mxu0 %v251
  %681 = vmatpush1.msra.mxu0 %v248
  %682 = vmatprep.subr.mxu0 0.0
  %683 = vmatpush2.msra.mxu0 0.0
  %684 = vmatprep.subr.mxu0 0.0
  %685 = vmatpush2.msra.mxu0 0.0
  %686 = vmatprep.subr.mxu0 0.0
  %687 = vmatpush2.msra.mxu0 0.0
  %688 = vmatprep.subr.mxu0 0.0
  %689 = vmatpush2.msra.mxu0 0.0
  %690 = vmatprep.subr.mxu0 0.0
  %691 = vmatpush2.msra.mxu0 0.0
  %692 = vmatprep.subr.mxu0 0.0
  %693 = vmatpush2.msra.mxu0 0.0
  %694 = vmatprep.subr.mxu0 0.0
  %695 = vmatpush2.msra.mxu0 0.0
  %696 = vmatprep.subr.mxu0 0.0
  %697 = vmatpush2.msra.mxu0 0.0
  %698 = vmatprep.subr.mxu0 0.0
  %699 = vmatpush2.msra.mxu0 0.0
  %700 = vmatprep.subr.mxu0 0.0
  %701 = vmatpush2.msra.mxu0 0.0
  %702 = vmatprep.subr.mxu0 0.0
  %703 = vmatpush2.msra.mxu0 0.0
  %704 = vmatprep.subr.mxu0 0.0
  %705 = vmatpush2.msra.mxu0 0.0
  %706 = vmatprep.subr.mxu0 0.0
  %707 = vmatpush2.msra.mxu0 0.0
  %708 = vmatprep.subr.mxu0 0.0
  %709 = vmatpush2.msra.mxu0 0.0
  %710 = vmatprep.subr.mxu0 0.0
  %711 = vmatpush2.msra.mxu0 0.0
  %712 = vmatprep.subr.mxu0 0.0
  %713 = vmatpush2.msra.mxu0 0.0
  %714 = vmatprep.mubr.f32.mxu0 0.0
  %715 = vmatmul.mubr.f32.gmra.mxu0 %v211
  %v716 = vpop.f32.mrf.mxu0
  %v717 = vadd.f32 %v202, %v716
  %v718 = vpop.f32.mrf.mxu0
  %v719 = vadd.f32 %v202, %v718
  %720 = vmatprep.mubr.f32.mxu0 0.0
  %721 = vmatmul.mubr.f32.gmra.mxu0 %v214
  %v722 = vpop.f32.mrf.mxu0
  %v723 = vadd.f32 %v207, %v722
  %v724 = vpop.f32.mrf.mxu0
  %v725 = vadd.f32 %v207, %v724
  %726 = vdwg.mxu0
  %727 = vmatprep.subr.mxu0 0.0
  %728 = vmatpush1.msra.mxu0 0.0
  %729 = vmatprep.subr.mxu0 0.0
  %730 = vmatpush1.msra.mxu0 0.0
  %731 = vmatprep.subr.mxu0 0.0
  %732 = vmatpush1.msra.mxu0 0.0
  %733 = vmatprep.subr.mxu0 0.0
  %734 = vmatpush1.msra.mxu0 0.0
  %735 = vmatprep.subr.mxu0 0.0
  %736 = vmatpush1.msra.mxu0 0.0
  %737 = vmatprep.subr.mxu0 0.0
  %738 = vmatpush1.msra.mxu0 0.0
  %739 = vmatprep.subr.mxu0 0.0
  %740 = vmatpush1.msra.mxu0 0.0
  %741 = vmatprep.subr.mxu0 0.0
  %742 = vmatpush1.msra.mxu0 0.0
  %743 = vmatprep.subr.mxu0 0.0
  %744 = vmatpush1.msra.mxu0 0.0
  %745 = vmatprep.subr.mxu0 0.0
  %746 = vmatpush1.msra.mxu0 0.0
  %747 = vmatprep.subr.mxu0 0.0
  %748 = vmatpush1.msra.mxu0 0.0
  %749 = vmatprep.subr.mxu0 0.0
  %750 = vmatpush1.msra.mxu0 0.0
  %751 = vmatprep.subr.mxu0 0.0
  %752 = vmatpush1.msra.mxu0 0.0
  %753 = vmatprep.subr.mxu0 0.0
  %754 = vmatpush1.msra.mxu0 0.0
  %755 = vmatprep.subr.mxu0 0.0
  %756 = vmatpush1.msra.mxu0 0.0
  %757 = vmatprep.subr.mxu0 %v257
  %758 = vmatpush1.msra.mxu0 %v254
  %759 = vmatprep.subr.mxu0 0.0
  %760 = vmatpush2.msra.mxu0 0.0
  %761 = vmatprep.subr.mxu0 0.0
  %762 = vmatpush2.msra.mxu0 0.0
  %763 = vmatprep.subr.mxu0 0.0
  %764 = vmatpush2.msra.mxu0 0.0
  %765 = vmatprep.subr.mxu0 0.0
  %766 = vmatpush2.msra.mxu0 0.0
  %767 = vmatprep.subr.mxu0 0.0
  %768 = vmatpush2.msra.mxu0 0.0
  %769 = vmatprep.subr.mxu0 0.0
  %770 = vmatpush2.msra.mxu0 0.0
  %771 = vmatprep.subr.mxu0 0.0
  %772 = vmatpush2.msra.mxu0 0.0
  %773 = vmatprep.subr.mxu0 0.0
  %774 = vmatpush2.msra.mxu0 0.0
  %775 = vmatprep.subr.mxu0 0.0
  %776 = vmatpush2.msra.mxu0 0.0
  %777 = vmatprep.subr.mxu0 0.0
  %778 = vmatpush2.msra.mxu0 0.0
  %779 = vmatprep.subr.mxu0 0.0
  %780 = vmatpush2.msra.mxu0 0.0
  %781 = vmatprep.subr.mxu0 0.0
  %782 = vmatpush2.msra.mxu0 0.0
  %783 = vmatprep.subr.mxu0 0.0
  %784 = vmatpush2.msra.mxu0 0.0
  %785 = vmatprep.subr.mxu0 0.0
  %786 = vmatpush2.msra.mxu0 0.0
  %787 = vmatprep.subr.mxu0 0.0
  %788 = vmatpush2.msra.mxu0 0.0
  %789 = vmatprep.subr.mxu0 0.0
  %790 = vmatpush2.msra.mxu0 0.0
  %791 = vmatprep.mubr.f32.mxu0 0.0
  %792 = vmatmul.mubr.f32.gmra.mxu0 %v211
  %v793 = vpop.f32.mrf.mxu0
  %v794 = vadd.f32 %v202, %v793
  %v795 = vpop.f32.mrf.mxu0
  %v796 = vadd.f32 %v202, %v795
  %797 = vmatprep.mubr.f32.mxu0 0.0
  %798 = vmatmul.mubr.f32.gmra.mxu0 %v214
  %v799 = vpop.f32.mrf.mxu0
  %v800 = vadd.f32 %v207, %v799
  %v801 = vpop.f32.mrf.mxu0
  %v802 = vadd.f32 %v207, %v801
  %803 = vdwg.mxu0
  %804 = vmatprep.subr.mxu0 0.0
  %805 = vmatpush1.msra.mxu0 0.0
  %806 = vmatprep.subr.mxu0 0.0
  %807 = vmatpush1.msra.mxu0 0.0
  %808 = vmatprep.subr.mxu0 0.0
  %809 = vmatpush1.msra.mxu0 0.0
  %810 = vmatprep.subr.mxu0 0.0
  %811 = vmatpush1.msra.mxu0 0.0
  %812 = vmatprep.subr.mxu0 0.0
  %813 = vmatpush1.msra.mxu0 0.0
  %814 = vmatprep.subr.mxu0 0.0
  %815 = vmatpush1.msra.mxu0 0.0
  %816 = vmatprep.subr.mxu0 0.0
  %817 = vmatpush1.msra.mxu0 0.0
  %818 = vmatprep.subr.mxu0 0.0
  %819 = vmatpush1.msra.mxu0 0.0
  %820 = vmatprep.subr.mxu0 0.0
  %821 = vmatpush1.msra.mxu0 0.0
  %822 = vmatprep.subr.mxu0 0.0
  %823 = vmatpush1.msra.mxu0 0.0
  %824 = vmatprep.subr.mxu0 0.0
  %825 = vmatpush1.msra.mxu0 0.0
  %826 = vmatprep.subr.mxu0 0.0
  %827 = vmatpush1.msra.mxu0 0.0
  %828 = vmatprep.subr.mxu0 0.0
  %829 = vmatpush1.msra.mxu0 0.0
  %830 = vmatprep.subr.mxu0 0.0
  %831 = vmatpush1.msra.mxu0 0.0
  %832 = vmatprep.subr.mxu0 0.0
  %833 = vmatpush1.msra.mxu0 0.0
  %834 = vmatprep.subr.mxu0 %v263
  %835 = vmatpush1.msra.mxu0 %v260
  %836 = vmatprep.subr.mxu0 0.0
  %837 = vmatpush2.msra.mxu0 0.0
  %838 = vmatprep.subr.mxu0 0.0
  %839 = vmatpush2.msra.mxu0 0.0
  %840 = vmatprep.subr.mxu0 0.0
  %841 = vmatpush2.msra.mxu0 0.0
  %842 = vmatprep.subr.mxu0 0.0
  %843 = vmatpush2.msra.mxu0 0.0
  %844 = vmatprep.subr.mxu0 0.0
  %845 = vmatpush2.msra.mxu0 0.0
  %846 = vmatprep.subr.mxu0 0.0
  %847 = vmatpush2.msra.mxu0 0.0
  %848 = vmatprep.subr.mxu0 0.0
  %849 = vmatpush2.msra.mxu0 0.0
  %850 = vmatprep.subr.mxu0 0.0
  %851 = vmatpush2.msra.mxu0 0.0
  %852 = vmatprep.subr.mxu0 0.0
  %853 = vmatpush2.msra.mxu0 0.0
  %854 = vmatprep.subr.mxu0 0.0
  %855 = vmatpush2.msra.mxu0 0.0
  %856 = vmatprep.subr.mxu0 0.0
  %857 = vmatpush2.msra.mxu0 0.0
  %858 = vmatprep.subr.mxu0 0.0
  %859 = vmatpush2.msra.mxu0 0.0
  %860 = vmatprep.subr.mxu0 0.0
  %861 = vmatpush2.msra.mxu0 0.0
  %862 = vmatprep.subr.mxu0 0.0
  %863 = vmatpush2.msra.mxu0 0.0
  %864 = vmatprep.subr.mxu0 0.0
  %865 = vmatpush2.msra.mxu0 0.0
  %866 = vmatprep.subr.mxu0 0.0
  %867 = vmatpush2.msra.mxu0 0.0
  %868 = vmatprep.mubr.f32.mxu0 0.0
  %869 = vmatmul.mubr.f32.gmra.mxu0 %v211
  %v870 = vpop.f32.mrf.mxu0
  %v871 = vadd.f32 %v202, %v870
  %v872 = vpop.f32.mrf.mxu0
  %v873 = vadd.f32 %v202, %v872
  %874 = vmatprep.mubr.f32.mxu0 0.0
  %875 = vmatmul.mubr.f32.gmra.mxu0 %v214
  %v876 = vpop.f32.mrf.mxu0
  %v877 = vadd.f32 %v207, %v876
  %v878 = vpop.f32.mrf.mxu0
  %v879 = vadd.f32 %v207, %v878
  %880 = vdwg.mxu0
  %v881 = vmax.f32 %v332, 0.0
  %v882 = vmax.f32 %v334, 0.0
  %v883 = vmax.f32 %v409, 0.0
  %v884 = vmax.f32 %v411, 0.0
  %v885 = vmax.f32 %v486, 0.0
  %v886 = vmax.f32 %v488, 0.0
  %v887 = vmax.f32 %v563, 0.0
  %v888 = vmax.f32 %v565, 0.0
  %v889 = vmax.f32 %v640, 0.0
  %v890 = vmax.f32 %v642, 0.0
  %v891 = vmax.f32 %v717, 0.0
  %v892 = vmax.f32 %v719, 0.0
  %v893 = vmax.f32 %v794, 0.0
  %v894 = vmax.f32 %v796, 0.0
  %v895 = vmax.f32 %v871, 0.0
  %v896 = vmax.f32 %v873, 0.0
  %v897 = vmax.f32 %v338, 0.0
  %v898 = vmax.f32 %v340, 0.0
  %v899 = vmax.f32 %v415, 0.0
  %v900 = vmax.f32 %v417, 0.0
  %v901 = vmax.f32 %v492, 0.0
  %v902 = vmax.f32 %v494, 0.0
  %v903 = vmax.f32 %v569, 0.0
  %v904 = vmax.f32 %v571, 0.0
  %v905 = vmax.f32 %v646, 0.0
  %v906 = vmax.f32 %v648, 0.0
  %v907 = vmax.f32 %v723, 0.0
  %v908 = vmax.f32 %v725, 0.0
  %v909 = vmax.f32 %v800, 0.0
  %v910 = vmax.f32 %v802, 0.0
  %v911 = vmax.f32 %v877, 0.0
  %v912 = vmax.f32 %v879, 0.0
  %v913 = vld [vmem:[%s3] sm:$0xff]
  %v914 = vld [vmem:[%s3 + $0x8] sm:$0xff]
  %v915 = vld [vmem:[%s3 + $0x10] sm:$0xff]
  %v916 = vld [vmem:[%s3 + $0x18] sm:$0xff]
  %v917 = vld [vmem:[%s4] sm:$0xff]
  %v918 = vld [vmem:[%s4 + $0x8] sm:$0xff]
  %v919 = vld [vmem:[%s4 + $0x10] sm:$0xff]
  %v920 = vld [vmem:[%s4 + $0x18] sm:$0xff]
  %922 = vset.pattern.permute.xlu0 0
  %923 = vperm.xlu0 %922, %v917
  %v924 = vpop.permute.xlu0 %923
  %927 = vset.pattern.permute.xlu0 0
  %928 = vperm.xlu0 %927, %v918
  %v929 = vpop.permute.xlu0 %928
  %932 = vset.pattern.permute.xlu0 0
  %933 = vperm.xlu0 %932, %v919
  %v934 = vpop.permute.xlu0 %933
  %937 = vset.pattern.permute.xlu0 0
  %938 = vperm.xlu0 %937, %v920
  %v939 = vpop.permute.xlu0 %938
  %vm941 = vcmask 392192
  %v943 = vsel %vm941, %v913, 0
  %v946 = vsel %vm941, %v914, 0
  %v949 = vsel %vm941, %v915, 0
  %v952 = vsel %vm941, %v916, 0
  %954 = vmatprep.subr.mxu0 0.0
  %955 = vmatpush1.msra.mxu0 0.0
  %956 = vmatprep.subr.mxu0 0.0
  %957 = vmatpush1.msra.mxu0 0.0
  %958 = vmatprep.subr.mxu0 0.0
  %959 = vmatpush1.msra.mxu0 0.0
  %960 = vmatprep.subr.mxu0 0.0
  %961 = vmatpush1.msra.mxu0 0.0
  %962 = vmatprep.subr.mxu0 0.0
  %963 = vmatpush1.msra.mxu0 0.0
  %964 = vmatprep.subr.mxu0 0.0
  %965 = vmatpush1.msra.mxu0 0.0
  %966 = vmatprep.subr.mxu0 0.0
  %967 = vmatpush1.msra.mxu0 0.0
  %968 = vmatprep.subr.mxu0 0.0
  %969 = vmatpush1.msra.mxu0 0.0
  %970 = vmatprep.subr.mxu0 0.0
  %971 = vmatpush1.msra.mxu0 0.0
  %972 = vmatprep.subr.mxu0 0.0
  %973 = vmatpush1.msra.mxu0 0.0
  %974 = vmatprep.subr.mxu0 %v899
  %975 = vmatpush1.msra.mxu0 %v898
  %976 = vmatprep.subr.mxu0 %v883
  %977 = vmatpush1.msra.mxu0 %v882
  %978 = vmatprep.subr.mxu0 %v898
  %979 = vmatpush1.msra.mxu0 %v897
  %980 = vmatprep.subr.mxu0 %v882
  %981 = vmatpush1.msra.mxu0 %v881
  %982 = vmatprep.subr.mxu0 %v897
  %983 = vmatpush1.msra.mxu0 0.0
  %984 = vmatprep.subr.mxu0 %v881
  %985 = vmatpush1.msra.mxu0 0.0
  %986 = vmatprep.subr.mxu0 0.0
  %987 = vmatpush2.msra.mxu0 0.0
  %988 = vmatprep.subr.mxu0 0.0
  %989 = vmatpush2.msra.mxu0 0.0
  %990 = vmatprep.subr.mxu0 0.0
  %991 = vmatpush2.msra.mxu0 0.0
  %992 = vmatprep.subr.mxu0 0.0
  %993 = vmatpush2.msra.mxu0 0.0
  %994 = vmatprep.subr.mxu0 0.0
  %995 = vmatpush2.msra.mxu0 0.0
  %996 = vmatprep.subr.mxu0 0.0
  %997 = vmatpush2.msra.mxu0 0.0
  %998 = vmatprep.subr.mxu0 0.0
  %999 = vmatpush2.msra.mxu0 0.0
  %1000 = vmatprep.subr.mxu0 0.0
  %1001 = vmatpush2.msra.mxu0 0.0
  %1002 = vmatprep.subr.mxu0 0.0
  %1003 = vmatpush2.msra.mxu0 0.0
  %1004 = vmatprep.subr.mxu0 0.0
  %1005 = vmatpush2.msra.mxu0 0.0
  %1006 = vmatprep.subr.mxu0 0.0
  %1007 = vmatpush2.msra.mxu0 0.0
  %1008 = vmatprep.subr.mxu0 0.0
  %1009 = vmatpush2.msra.mxu0 0.0
  %1010 = vmatprep.subr.mxu0 0.0
  %1011 = vmatpush2.msra.mxu0 0.0
  %1012 = vmatprep.subr.mxu0 0.0
  %1013 = vmatpush2.msra.mxu0 0.0
  %1014 = vmatprep.subr.mxu0 0.0
  %1015 = vmatpush2.msra.mxu0 0.0
  %1016 = vmatprep.subr.mxu0 0.0
  %1017 = vmatpush2.msra.mxu0 0.0
  %1018 = vmatprep.mubr.f32.mxu0 0.0
  %1019 = vmatmul.mubr.f32.gmra.mxu0 %v943
  %v1020 = vpop.f32.mrf.mxu0
  %v1021 = vadd.f32 %v924, %v1020
  %v1022 = vpop.f32.mrf.mxu0
  %v1023 = vadd.f32 %v924, %v1022
  %1024 = vmatprep.mubr.f32.mxu0 0.0
  %1025 = vmatmul.mubr.f32.gmra.mxu0 %v946
  %v1026 = vpop.f32.mrf.mxu0
  %v1027 = vadd.f32 %v929, %v1026
  %v1028 = vpop.f32.mrf.mxu0
  %v1029 = vadd.f32 %v929, %v1028
  %1030 = vmatprep.mubr.f32.mxu0 0.0
  %1031 = vmatmul.mubr.f32.gmra.mxu0 %v949
  %v1032 = vpop.f32.mrf.mxu0
  %v1033 = vadd.f32 %v934, %v1032
  %v1034 = vpop.f32.mrf.mxu0
  %v1035 = vadd.f32 %v934, %v1034
  %1036 = vmatprep.mubr.f32.mxu0 0.0
  %1037 = vmatmul.mubr.f32.gmra.mxu0 %v952
  %v1038 = vpop.f32.mrf.mxu0
  %v1039 = vadd.f32 %v939, %v1038
  %v1040 = vpop.f32.mrf.mxu0
  %v1041 = vadd.f32 %v939, %v1040
  %1042 = vdwg.mxu0
  %1043 = vmatprep.subr.mxu0 0.0
  %1044 = vmatpush1.msra.mxu0 0.0
  %1045 = vmatprep.subr.mxu0 0.0
  %1046 = vmatpush1.msra.mxu0 0.0
  %1047 = vmatprep.subr.mxu0 0.0
  %1048 = vmatpush1.msra.mxu0 0.0
  %1049 = vmatprep.subr.mxu0 0.0
  %1050 = vmatpush1.msra.mxu0 0.0
  %1051 = vmatprep.subr.mxu0 0.0
  %1052 = vmatpush1.msra.mxu0 0.0
  %1053 = vmatprep.subr.mxu0 0.0
  %1054 = vmatpush1.msra.mxu0 0.0
  %1055 = vmatprep.subr.mxu0 0.0
  %1056 = vmatpush1.msra.mxu0 0.0
  %1057 = vmatprep.subr.mxu0 0.0
  %1058 = vmatpush1.msra.mxu0 0.0
  %1059 = vmatprep.subr.mxu0 0.0
  %1060 = vmatpush1.msra.mxu0 0.0
  %1061 = vmatprep.subr.mxu0 0.0
  %1062 = vmatpush1.msra.mxu0 0.0
  %1063 = vmatprep.subr.mxu0 %v901
  %1064 = vmatpush1.msra.mxu0 %v900
  %1065 = vmatprep.subr.mxu0 %v885
  %1066 = vmatpush1.msra.mxu0 %v884
  %1067 = vmatprep.subr.mxu0 %v900
  %1068 = vmatpush1.msra.mxu0 %v899
  %1069 = vmatprep.subr.mxu0 %v884
  %1070 = vmatpush1.msra.mxu0 %v883
  %1071 = vmatprep.subr.mxu0 %v899
  %1072 = vmatpush1.msra.mxu0 %v898
  %1073 = vmatprep.subr.mxu0 %v883
  %1074 = vmatpush1.msra.mxu0 %v882
  %1075 = vmatprep.subr.mxu0 0.0
  %1076 = vmatpush2.msra.mxu0 0.0
  %1077 = vmatprep.subr.mxu0 0.0
  %1078 = vmatpush2.msra.mxu0 0.0
  %1079 = vmatprep.subr.mxu0 0.0
  %1080 = vmatpush2.msra.mxu0 0.0
  %1081 = vmatprep.subr.mxu0 0.0
  %1082 = vmatpush2.msra.mxu0 0.0
  %1083 = vmatprep.subr.mxu0 0.0
  %1084 = vmatpush2.msra.mxu0 0.0
  %1085 = vmatprep.subr.mxu0 0.0
  %1086 = vmatpush2.msra.mxu0 0.0
  %1087 = vmatprep.subr.mxu0 0.0
  %1088 = vmatpush2.msra.mxu0 0.0
  %1089 = vmatprep.subr.mxu0 0.0
  %1090 = vmatpush2.msra.mxu0 0.0
  %1091 = vmatprep.subr.mxu0 0.0
  %1092 = vmatpush2.msra.mxu0 0.0
  %1093 = vmatprep.subr.mxu0 0.0
  %1094 = vmatpush2.msra.mxu0 0.0
  %1095 = vmatprep.subr.mxu0 0.0
  %1096 = vmatpush2.msra.mxu0 0.0
  %1097 = vmatprep.subr.mxu0 0.0
  %1098 = vmatpush2.msra.mxu0 0.0
  %1099 = vmatprep.subr.mxu0 0.0
  %1100 = vmatpush2.msra.mxu0 0.0
  %1101 = vmatprep.subr.mxu0 0.0
  %1102 = vmatpush2.msra.mxu0 0.0
  %1103 = vmatprep.subr.mxu0 0.0
  %1104 = vmatpush2.msra.mxu0 0.0
  %1105 = vmatprep.subr.mxu0 0.0
  %1106 = vmatpush2.msra.mxu0 0.0
  %1107 = vmatprep.mubr.f32.mxu0 0.0
  %1108 = vmatmul.mubr.f32.gmra.mxu0 %v943
  %v1109 = vpop.f32.mrf.mxu0
  %v1110 = vadd.f32 %v924, %v1109
  %v1111 = vpop.f32.mrf.mxu0
  %v1112 = vadd.f32 %v924, %v1111
  %1113 = vmatprep.mubr.f32.mxu0 0.0
  %1114 = vmatmul.mubr.f32.gmra.mxu0 %v946
  %v1115 = vpop.f32.mrf.mxu0
  %v1116 = vadd.f32 %v929, %v1115
  %v1117 = vpop.f32.mrf.mxu0
  %v1118 = vadd.f32 %v929, %v1117
  %1119 = vmatprep.mubr.f32.mxu0 0.0
  %1120 = vmatmul.mubr.f32.gmra.mxu0 %v949
  %v1121 = vpop.f32.mrf.mxu0
  %v1122 = vadd.f32 %v934, %v1121
  %v1123 = vpop.f32.mrf.mxu0
  %v1124 = vadd.f32 %v934, %v1123
  %1125 = vmatprep.mubr.f32.mxu0 0.0
  %1126 = vmatmul.mubr.f32.gmra.mxu0 %v952
  %v1127 = vpop.f32.mrf.mxu0
  %v1128 = vadd.f32 %v939, %v1127
  %v1129 = vpop.f32.mrf.mxu0
  %v1130 = vadd.f32 %v939, %v1129
  %1131 = vdwg.mxu0
  %1132 = vmatprep.subr.mxu0 0.0
  %1133 = vmatpush1.msra.mxu0 0.0
  %1134 = vmatprep.subr.mxu0 0.0
  %1135 = vmatpush1.msra.mxu0 0.0
  %1136 = vmatprep.subr.mxu0 0.0
  %1137 = vmatpush1.msra.mxu0 0.0
  %1138 = vmatprep.subr.mxu0 0.0
  %1139 = vmatpush1.msra.mxu0 0.0
  %1140 = vmatprep.subr.mxu0 0.0
  %1141 = vmatpush1.msra.mxu0 0.0
  %1142 = vmatprep.subr.mxu0 0.0
  %1143 = vmatpush1.msra.mxu0 0.0
  %1144 = vmatprep.subr.mxu0 0.0
  %1145 = vmatpush1.msra.mxu0 0.0
  %1146 = vmatprep.subr.mxu0 0.0
  %1147 = vmatpush1.msra.mxu0 0.0
  %1148 = vmatprep.subr.mxu0 0.0
  %1149 = vmatpush1.msra.mxu0 0.0
  %1150 = vmatprep.subr.mxu0 0.0
  %1151 = vmatpush1.msra.mxu0 0.0
  %1152 = vmatprep.subr.mxu0 %v903
  %1153 = vmatpush1.msra.mxu0 %v902
  %1154 = vmatprep.subr.mxu0 %v887
  %1155 = vmatpush1.msra.mxu0 %v886
  %1156 = vmatprep.subr.mxu0 %v902
  %1157 = vmatpush1.msra.mxu0 %v901
  %1158 = vmatprep.subr.mxu0 %v886
  %1159 = vmatpush1.msra.mxu0 %v885
  %1160 = vmatprep.subr.mxu0 %v901
  %1161 = vmatpush1.msra.mxu0 %v900
  %1162 = vmatprep.subr.mxu0 %v885
  %1163 = vmatpush1.msra.mxu0 %v884
  %1164 = vmatprep.subr.mxu0 0.0
  %1165 = vmatpush2.msra.mxu0 0.0
  %1166 = vmatprep.subr.mxu0 0.0
  %1167 = vmatpush2.msra.mxu0 0.0
  %1168 = vmatprep.subr.mxu0 0.0
  %1169 = vmatpush2.msra.mxu0 0.0
  %1170 = vmatprep.subr.mxu0 0.0
  %1171 = vmatpush2.msra.mxu0 0.0
  %1172 = vmatprep.subr.mxu0 0.0
  %1173 = vmatpush2.msra.mxu0 0.0
  %1174 = vmatprep.subr.mxu0 0.0
  %1175 = vmatpush2.msra.mxu0 0.0
  %1176 = vmatprep.subr.mxu0 0.0
  %1177 = vmatpush2.msra.mxu0 0.0
  %1178 = vmatprep.subr.mxu0 0.0
  %1179 = vmatpush2.msra.mxu0 0.0
  %1180 = vmatprep.subr.mxu0 0.0
  %1181 = vmatpush2.msra.mxu0 0.0
  %1182 = vmatprep.subr.mxu0 0.0
  %1183 = vmatpush2.msra.mxu0 0.0
  %1184 = vmatprep.subr.mxu0 0.0
  %1185 = vmatpush2.msra.mxu0 0.0
  %1186 = vmatprep.subr.mxu0 0.0
  %1187 = vmatpush2.msra.mxu0 0.0
  %1188 = vmatprep.subr.mxu0 0.0
  %1189 = vmatpush2.msra.mxu0 0.0
  %1190 = vmatprep.subr.mxu0 0.0
  %1191 = vmatpush2.msra.mxu0 0.0
  %1192 = vmatprep.subr.mxu0 0.0
  %1193 = vmatpush2.msra.mxu0 0.0
  %1194 = vmatprep.subr.mxu0 0.0
  %1195 = vmatpush2.msra.mxu0 0.0
  %1196 = vmatprep.mubr.f32.mxu0 0.0
  %1197 = vmatmul.mubr.f32.gmra.mxu0 %v943
  %v1198 = vpop.f32.mrf.mxu0
  %v1199 = vadd.f32 %v924, %v1198
  %v1200 = vpop.f32.mrf.mxu0
  %v1201 = vadd.f32 %v924, %v1200
  %1202 = vmatprep.mubr.f32.mxu0 0.0
  %1203 = vmatmul.mubr.f32.gmra.mxu0 %v946
  %v1204 = vpop.f32.mrf.mxu0
  %v1205 = vadd.f32 %v929, %v1204
  %v1206 = vpop.f32.mrf.mxu0
  %v1207 = vadd.f32 %v929, %v1206
  %1208 = vmatprep.mubr.f32.mxu0 0.0
  %1209 = vmatmul.mubr.f32.gmra.mxu0 %v949
  %v1210 = vpop.f32.mrf.mxu0
  %v1211 = vadd.f32 %v934, %v1210
  %v1212 = vpop.f32.mrf.mxu0
  %v1213 = vadd.f32 %v934, %v1212
  %1214 = vmatprep.mubr.f32.mxu0 0.0
  %1215 = vmatmul.mubr.f32.gmra.mxu0 %v952
  %v1216 = vpop.f32.mrf.mxu0
  %v1217 = vadd.f32 %v939, %v1216
  %v1218 = vpop.f32.mrf.mxu0
  %v1219 = vadd.f32 %v939, %v1218
  %1220 = vdwg.mxu0
  %1221 = vmatprep.subr.mxu0 0.0
  %1222 = vmatpush1.msra.mxu0 0.0
  %1223 = vmatprep.subr.mxu0 0.0
  %1224 = vmatpush1.msra.mxu0 0.0
  %1225 = vmatprep.subr.mxu0 0.0
  %1226 = vmatpush1.msra.mxu0 0.0
  %1227 = vmatprep.subr.mxu0 0.0
  %1228 = vmatpush1.msra.mxu0 0.0
  %1229 = vmatprep.subr.mxu0 0.0
  %1230 = vmatpush1.msra.mxu0 0.0
  %1231 = vmatprep.subr.mxu0 0.0
  %1232 = vmatpush1.msra.mxu0 0.0
  %1233 = vmatprep.subr.mxu0 0.0
  %1234 = vmatpush1.msra.mxu0 0.0
  %1235 = vmatprep.subr.mxu0 0.0
  %1236 = vmatpush1.msra.mxu0 0.0
  %1237 = vmatprep.subr.mxu0 0.0
  %1238 = vmatpush1.msra.mxu0 0.0
  %1239 = vmatprep.subr.mxu0 0.0
  %1240 = vmatpush1.msra.mxu0 0.0
  %1241 = vmatprep.subr.mxu0 %v905
  %1242 = vmatpush1.msra.mxu0 %v904
  %1243 = vmatprep.subr.mxu0 %v889
  %1244 = vmatpush1.msra.mxu0 %v888
  %1245 = vmatprep.subr.mxu0 %v904
  %1246 = vmatpush1.msra.mxu0 %v903
  %1247 = vmatprep.subr.mxu0 %v888
  %1248 = vmatpush1.msra.mxu0 %v887
  %1249 = vmatprep.subr.mxu0 %v903
  %1250 = vmatpush1.msra.mxu0 %v902
  %1251 = vmatprep.subr.mxu0 %v887
  %1252 = vmatpush1.msra.mxu0 %v886
  %1253 = vmatprep.subr.mxu0 0.0
  %1254 = vmatpush2.msra.mxu0 0.0
  %1255 = vmatprep.subr.mxu0 0.0
  %1256 = vmatpush2.msra.mxu0 0.0
  %1257 = vmatprep.subr.mxu0 0.0
  %1258 = vmatpush2.msra.mxu0 0.0
  %1259 = vmatprep.subr.mxu0 0.0
  %1260 = vmatpush2.msra.mxu0 0.0
  %1261 = vmatprep.subr.mxu0 0.0
  %1262 = vmatpush2.msra.mxu0 0.0
  %1263 = vmatprep.subr.mxu0 0.0
  %1264 = vmatpush2.msra.mxu0 0.0
  %1265 = vmatprep.subr.mxu0 0.0
  %1266 = vmatpush2.msra.mxu0 0.0
  %1267 = vmatprep.subr.mxu0 0.0
  %1268 = vmatpush2.msra.mxu0 0.0
  %1269 = vmatprep.subr.mxu0 0.0
  %1270 = vmatpush2.msra.mxu0 0.0
  %1271 = vmatprep.subr.mxu0 0.0
  %1272 = vmatpush2.msra.mxu0 0.0
  %1273 = vmatprep.subr.mxu0 0.0
  %1274 = vmatpush2.msra.mxu0 0.0
  %1275 = vmatprep.subr.mxu0 0.0
  %1276 = vmatpush2.msra.mxu0 0.0
  %1277 = vmatprep.subr.mxu0 0.0
  %1278 = vmatpush2.msra.mxu0 0.0
  %1279 = vmatprep.subr.mxu0 0.0
  %1280 = vmatpush2.msra.mxu0 0.0
  %1281 = vmatprep.subr.mxu0 0.0
  %1282 = vmatpush2.msra.mxu0 0.0
  %1283 = vmatprep.subr.mxu0 0.0
  %1284 = vmatpush2.msra.mxu0 0.0
  %1285 = vmatprep.mubr.f32.mxu0 0.0
  %1286 = vmatmul.mubr.f32.gmra.mxu0 %v943
  %v1287 = vpop.f32.mrf.mxu0
  %v1288 = vadd.f32 %v924, %v1287
  %v1289 = vpop.f32.mrf.mxu0
  %v1290 = vadd.f32 %v924, %v1289
  %1291 = vmatprep.mubr.f32.mxu0 0.0
  %1292 = vmatmul.mubr.f32.gmra.mxu0 %v946
  %v1293 = vpop.f32.mrf.mxu0
  %v1294 = vadd.f32 %v929, %v1293
  %v1295 = vpop.f32.mrf.mxu0
  %v1296 = vadd.f32 %v929, %v1295
  %1297 = vmatprep.mubr.f32.mxu0 0.0
  %1298 = vmatmul.mubr.f32.gmra.mxu0 %v949
  %v1299 = vpop.f32.mrf.mxu0
  %v1300 = vadd.f32 %v934, %v1299
  %v1301 = vpop.f32.mrf.mxu0
  %v1302 = vadd.f32 %v934, %v1301
  %1303 = vmatprep.mubr.f32.mxu0 0.0
  %1304 = vmatmul.mubr.f32.gmra.mxu0 %v952
  %v1305 = vpop.f32.mrf.mxu0
  %v1306 = vadd.f32 %v939, %v1305
  %v1307 = vpop.f32.mrf.mxu0
  %v1308 = vadd.f32 %v939, %v1307
  %1309 = vdwg.mxu0
  %1310 = vmatprep.subr.mxu0 0.0
  %1311 = vmatpush1.msra.mxu0 0.0
  %1312 = vmatprep.subr.mxu0 0.0
  %1313 = vmatpush1.msra.mxu0 0.0
  %1314 = vmatprep.subr.mxu0 0.0
  %1315 = vmatpush1.msra.mxu0 0.0
  %1316 = vmatprep.subr.mxu0 0.0
  %1317 = vmatpush1.msra.mxu0 0.0
  %1318 = vmatprep.subr.mxu0 0.0
  %1319 = vmatpush1.msra.mxu0 0.0
  %1320 = vmatprep.subr.mxu0 0.0
  %1321 = vmatpush1.msra.mxu0 0.0
  %1322 = vmatprep.subr.mxu0 0.0
  %1323 = vmatpush1.msra.mxu0 0.0
  %1324 = vmatprep.subr.mxu0 0.0
  %1325 = vmatpush1.msra.mxu0 0.0
  %1326 = vmatprep.subr.mxu0 0.0
  %1327 = vmatpush1.msra.mxu0 0.0
  %1328 = vmatprep.subr.mxu0 0.0
  %1329 = vmatpush1.msra.mxu0 0.0
  %1330 = vmatprep.subr.mxu0 %v907
  %1331 = vmatpush1.msra.mxu0 %v906
  %1332 = vmatprep.subr.mxu0 %v891
  %1333 = vmatpush1.msra.mxu0 %v890
  %1334 = vmatprep.subr.mxu0 %v906
  %1335 = vmatpush1.msra.mxu0 %v905
  %1336 = vmatprep.subr.mxu0 %v890
  %1337 = vmatpush1.msra.mxu0 %v889
  %1338 = vmatprep.subr.mxu0 %v905
  %1339 = vmatpush1.msra.mxu0 %v904
  %1340 = vmatprep.subr.mxu0 %v889
  %1341 = vmatpush1.msra.mxu0 %v888
  %1342 = vmatprep.subr.mxu0 0.0
  %1343 = vmatpush2.msra.mxu0 0.0
  %1344 = vmatprep.subr.mxu0 0.0
  %1345 = vmatpush2.msra.mxu0 0.0
  %1346 = vmatprep.subr.mxu0 0.0
  %1347 = vmatpush2.msra.mxu0 0.0
  %1348 = vmatprep.subr.mxu0 0.0
  %1349 = vmatpush2.msra.mxu0 0.0
  %1350 = vmatprep.subr.mxu0 0.0
  %1351 = vmatpush2.msra.mxu0 0.0
  %1352 = vmatprep.subr.mxu0 0.0
  %1353 = vmatpush2.msra.mxu0 0.0
  %1354 = vmatprep.subr.mxu0 0.0
  %1355 = vmatpush2.msra.mxu0 0.0
  %1356 = vmatprep.subr.mxu0 0.0
  %1357 = vmatpush2.msra.mxu0 0.0
  %1358 = vmatprep.subr.mxu0 0.0
  %1359 = vmatpush2.msra.mxu0 0.0
  %1360 = vmatprep.subr.mxu0 0.0
  %1361 = vmatpush2.msra.mxu0 0.0
  %1362 = vmatprep.subr.mxu0 0.0
  %1363 = vmatpush2.msra.mxu0 0.0
  %1364 = vmatprep.subr.mxu0 0.0
  %1365 = vmatpush2.msra.mxu0 0.0
  %1366 = vmatprep.subr.mxu0 0.0
  %1367 = vmatpush2.msra.mxu0 0.0
  %1368 = vmatprep.subr.mxu0 0.0
  %1369 = vmatpush2.msra.mxu0 0.0
  %1370 = vmatprep.subr.mxu0 0.0
  %1371 = vmatpush2.msra.mxu0 0.0
  %1372 = vmatprep.subr.mxu0 0.0
  %1373 = vmatpush2.msra.mxu0 0.0
  %1374 = vmatprep.mubr.f32.mxu0 0.0
  %1375 = vmatmul.mubr.f32.gmra.mxu0 %v943
  %v1376 = vpop.f32.mrf.mxu0
  %v1377 = vadd.f32 %v924, %v1376
  %v1378 = vpop.f32.mrf.mxu0
  %v1379 = vadd.f32 %v924, %v1378
  %1380 = vmatprep.mubr.f32.mxu0 0.0
  %1381 = vmatmul.mubr.f32.gmra.mxu0 %v946
  %v1382 = vpop.f32.mrf.mxu0
  %v1383 = vadd.f32 %v929, %v1382
  %v1384 = vpop.f32.mrf.mxu0
  %v1385 = vadd.f32 %v929, %v1384
  %1386 = vmatprep.mubr.f32.mxu0 0.0
  %1387 = vmatmul.mubr.f32.gmra.mxu0 %v949
  %v1388 = vpop.f32.mrf.mxu0
  %v1389 = vadd.f32 %v934, %v1388
  %v1390 = vpop.f32.mrf.mxu0
  %v1391 = vadd.f32 %v934, %v1390
  %1392 = vmatprep.mubr.f32.mxu0 0.0
  %1393 = vmatmul.mubr.f32.gmra.mxu0 %v952
  %v1394 = vpop.f32.mrf.mxu0
  %v1395 = vadd.f32 %v939, %v1394
  %v1396 = vpop.f32.mrf.mxu0
  %v1397 = vadd.f32 %v939, %v1396
  %1398 = vdwg.mxu0
  %1399 = vmatprep.subr.mxu0 0.0
  %1400 = vmatpush1.msra.mxu0 0.0
  %1401 = vmatprep.subr.mxu0 0.0
  %1402 = vmatpush1.msra.mxu0 0.0
  %1403 = vmatprep.subr.mxu0 0.0
  %1404 = vmatpush1.msra.mxu0 0.0
  %1405 = vmatprep.subr.mxu0 0.0
  %1406 = vmatpush1.msra.mxu0 0.0
  %1407 = vmatprep.subr.mxu0 0.0
  %1408 = vmatpush1.msra.mxu0 0.0
  %1409 = vmatprep.subr.mxu0 0.0
  %1410 = vmatpush1.msra.mxu0 0.0
  %1411 = vmatprep.subr.mxu0 0.0
  %1412 = vmatpush1.msra.mxu0 0.0
  %1413 = vmatprep.subr.mxu0 0.0
  %1414 = vmatpush1.msra.mxu0 0.0
  %1415 = vmatprep.subr.mxu0 0.0
  %1416 = vmatpush1.msra.mxu0 0.0
  %1417 = vmatprep.subr.mxu0 0.0
  %1418 = vmatpush1.msra.mxu0 0.0
  %1419 = vmatprep.subr.mxu0 %v909
  %1420 = vmatpush1.msra.mxu0 %v908
  %1421 = vmatprep.subr.mxu0 %v893
  %1422 = vmatpush1.msra.mxu0 %v892
  %1423 = vmatprep.subr.mxu0 %v908
  %1424 = vmatpush1.msra.mxu0 %v907
  %1425 = vmatprep.subr.mxu0 %v892
  %1426 = vmatpush1.msra.mxu0 %v891
  %1427 = vmatprep.subr.mxu0 %v907
  %1428 = vmatpush1.msra.mxu0 %v906
  %1429 = vmatprep.subr.mxu0 %v891
  %1430 = vmatpush1.msra.mxu0 %v890
  %1431 = vmatprep.subr.mxu0 0.0
  %1432 = vmatpush2.msra.mxu0 0.0
  %1433 = vmatprep.subr.mxu0 0.0
  %1434 = vmatpush2.msra.mxu0 0.0
  %1435 = vmatprep.subr.mxu0 0.0
  %1436 = vmatpush2.msra.mxu0 0.0
  %1437 = vmatprep.subr.mxu0 0.0
  %1438 = vmatpush2.msra.mxu0 0.0
  %1439 = vmatprep.subr.mxu0 0.0
  %1440 = vmatpush2.msra.mxu0 0.0
  %1441 = vmatprep.subr.mxu0 0.0
  %1442 = vmatpush2.msra.mxu0 0.0
  %1443 = vmatprep.subr.mxu0 0.0
  %1444 = vmatpush2.msra.mxu0 0.0
  %1445 = vmatprep.subr.mxu0 0.0
  %1446 = vmatpush2.msra.mxu0 0.0
  %1447 = vmatprep.subr.mxu0 0.0
  %1448 = vmatpush2.msra.mxu0 0.0
  %1449 = vmatprep.subr.mxu0 0.0
  %1450 = vmatpush2.msra.mxu0 0.0
  %1451 = vmatprep.subr.mxu0 0.0
  %1452 = vmatpush2.msra.mxu0 0.0
  %1453 = vmatprep.subr.mxu0 0.0
  %1454 = vmatpush2.msra.mxu0 0.0
  %1455 = vmatprep.subr.mxu0 0.0
  %1456 = vmatpush2.msra.mxu0 0.0
  %1457 = vmatprep.subr.mxu0 0.0
  %1458 = vmatpush2.msra.mxu0 0.0
  %1459 = vmatprep.subr.mxu0 0.0
  %1460 = vmatpush2.msra.mxu0 0.0
  %1461 = vmatprep.subr.mxu0 0.0
  %1462 = vmatpush2.msra.mxu0 0.0
  %1463 = vmatprep.mubr.f32.mxu0 0.0
  %1464 = vmatmul.mubr.f32.gmra.mxu0 %v943
  %v1465 = vpop.f32.mrf.mxu0
  %v1466 = vadd.f32 %v924, %v1465
  %v1467 = vpop.f32.mrf.mxu0
  %v1468 = vadd.f32 %v924, %v1467
  %1469 = vmatprep.mubr.f32.mxu0 0.0
  %1470 = vmatmul.mubr.f32.gmra.mxu0 %v946
  %v1471 = vpop.f32.mrf.mxu0
  %v1472 = vadd.f32 %v929, %v1471
  %v1473 = vpop.f32.mrf.mxu0
  %v1474 = vadd.f32 %v929, %v1473
  %1475 = vmatprep.mubr.f32.mxu0 0.0
  %1476 = vmatmul.mubr.f32.gmra.mxu0 %v949
  %v1477 = vpop.f32.mrf.mxu0
  %v1478 = vadd.f32 %v934, %v1477
  %v1479 = vpop.f32.mrf.mxu0
  %v1480 = vadd.f32 %v934, %v1479
  %1481 = vmatprep.mubr.f32.mxu0 0.0
  %1482 = vmatmul.mubr.f32.gmra.mxu0 %v952
  %v1483 = vpop.f32.mrf.mxu0
  %v1484 = vadd.f32 %v939, %v1483
  %v1485 = vpop.f32.mrf.mxu0
  %v1486 = vadd.f32 %v939, %v1485
  %1487 = vdwg.mxu0
  %1488 = vmatprep.subr.mxu0 0.0
  %1489 = vmatpush1.msra.mxu0 0.0
  %1490 = vmatprep.subr.mxu0 0.0
  %1491 = vmatpush1.msra.mxu0 0.0
  %1492 = vmatprep.subr.mxu0 0.0
  %1493 = vmatpush1.msra.mxu0 0.0
  %1494 = vmatprep.subr.mxu0 0.0
  %1495 = vmatpush1.msra.mxu0 0.0
  %1496 = vmatprep.subr.mxu0 0.0
  %1497 = vmatpush1.msra.mxu0 0.0
  %1498 = vmatprep.subr.mxu0 0.0
  %1499 = vmatpush1.msra.mxu0 0.0
  %1500 = vmatprep.subr.mxu0 0.0
  %1501 = vmatpush1.msra.mxu0 0.0
  %1502 = vmatprep.subr.mxu0 0.0
  %1503 = vmatpush1.msra.mxu0 0.0
  %1504 = vmatprep.subr.mxu0 0.0
  %1505 = vmatpush1.msra.mxu0 0.0
  %1506 = vmatprep.subr.mxu0 0.0
  %1507 = vmatpush1.msra.mxu0 0.0
  %1508 = vmatprep.subr.mxu0 %v911
  %1509 = vmatpush1.msra.mxu0 %v910
  %1510 = vmatprep.subr.mxu0 %v895
  %1511 = vmatpush1.msra.mxu0 %v894
  %1512 = vmatprep.subr.mxu0 %v910
  %1513 = vmatpush1.msra.mxu0 %v909
  %1514 = vmatprep.subr.mxu0 %v894
  %1515 = vmatpush1.msra.mxu0 %v893
  %1516 = vmatprep.subr.mxu0 %v909
  %1517 = vmatpush1.msra.mxu0 %v908
  %1518 = vmatprep.subr.mxu0 %v893
  %1519 = vmatpush1.msra.mxu0 %v892
  %1520 = vmatprep.subr.mxu0 0.0
  %1521 = vmatpush2.msra.mxu0 0.0
  %1522 = vmatprep.subr.mxu0 0.0
  %1523 = vmatpush2.msra.mxu0 0.0
  %1524 = vmatprep.subr.mxu0 0.0
  %1525 = vmatpush2.msra.mxu0 0.0
  %1526 = vmatprep.subr.mxu0 0.0
  %1527 = vmatpush2.msra.mxu0 0.0
  %1528 = vmatprep.subr.mxu0 0.0
  %1529 = vmatpush2.msra.mxu0 0.0
  %1530 = vmatprep.subr.mxu0 0.0
  %1531 = vmatpush2.msra.mxu0 0.0
  %1532 = vmatprep.subr.mxu0 0.0
  %1533 = vmatpush2.msra.mxu0 0.0
  %1534 = vmatprep.subr.mxu0 0.0
  %1535 = vmatpush2.msra.mxu0 0.0
  %1536 = vmatprep.subr.mxu0 0.0
  %1537 = vmatpush2.msra.mxu0 0.0
  %1538 = vmatprep.subr.mxu0 0.0
  %1539 = vmatpush2.msra.mxu0 0.0
  %1540 = vmatprep.subr.mxu0 0.0
  %1541 = vmatpush2.msra.mxu0 0.0
  %1542 = vmatprep.subr.mxu0 0.0
  %1543 = vmatpush2.msra.mxu0 0.0
  %1544 = vmatprep.subr.mxu0 0.0
  %1545 = vmatpush2.msra.mxu0 0.0
  %1546 = vmatprep.subr.mxu0 0.0
  %1547 = vmatpush2.msra.mxu0 0.0
  %1548 = vmatprep.subr.mxu0 0.0
  %1549 = vmatpush2.msra.mxu0 0.0
  %1550 = vmatprep.subr.mxu0 0.0
  %1551 = vmatpush2.msra.mxu0 0.0
  %1552 = vmatprep.mubr.f32.mxu0 0.0
  %1553 = vmatmul.mubr.f32.gmra.mxu0 %v943
  %v1554 = vpop.f32.mrf.mxu0
  %v1555 = vadd.f32 %v924, %v1554
  %v1556 = vpop.f32.mrf.mxu0
  %v1557 = vadd.f32 %v924, %v1556
  %1558 = vmatprep.mubr.f32.mxu0 0.0
  %1559 = vmatmul.mubr.f32.gmra.mxu0 %v946
  %v1560 = vpop.f32.mrf.mxu0
  %v1561 = vadd.f32 %v929, %v1560
  %v1562 = vpop.f32.mrf.mxu0
  %v1563 = vadd.f32 %v929, %v1562
  %1564 = vmatprep.mubr.f32.mxu0 0.0
  %1565 = vmatmul.mubr.f32.gmra.mxu0 %v949
  %v1566 = vpop.f32.mrf.mxu0
  %v1567 = vadd.f32 %v934, %v1566
  %v1568 = vpop.f32.mrf.mxu0
  %v1569 = vadd.f32 %v934, %v1568
  %1570 = vmatprep.mubr.f32.mxu0 0.0
  %1571 = vmatmul.mubr.f32.gmra.mxu0 %v952
  %v1572 = vpop.f32.mrf.mxu0
  %v1573 = vadd.f32 %v939, %v1572
  %v1574 = vpop.f32.mrf.mxu0
  %v1575 = vadd.f32 %v939, %v1574
  %1576 = vdwg.mxu0
  %1577 = vmatprep.subr.mxu0 0.0
  %1578 = vmatpush1.msra.mxu0 0.0
  %1579 = vmatprep.subr.mxu0 0.0
  %1580 = vmatpush1.msra.mxu0 0.0
  %1581 = vmatprep.subr.mxu0 0.0
  %1582 = vmatpush1.msra.mxu0 0.0
  %1583 = vmatprep.subr.mxu0 0.0
  %1584 = vmatpush1.msra.mxu0 0.0
  %1585 = vmatprep.subr.mxu0 0.0
  %1586 = vmatpush1.msra.mxu0 0.0
  %1587 = vmatprep.subr.mxu0 0.0
  %1588 = vmatpush1.msra.mxu0 0.0
  %1589 = vmatprep.subr.mxu0 0.0
  %1590 = vmatpush1.msra.mxu0 0.0
  %1591 = vmatprep.subr.mxu0 0.0
  %1592 = vmatpush1.msra.mxu0 0.0
  %1593 = vmatprep.subr.mxu0 0.0
  %1594 = vmatpush1.msra.mxu0 0.0
  %1595 = vmatprep.subr.mxu0 0.0
  %1596 = vmatpush1.msra.mxu0 0.0
  %1597 = vmatprep.subr.mxu0 0.0
  %1598 = vmatpush1.msra.mxu0 %v912
  %1599 = vmatprep.subr.mxu0 0.0
  %1600 = vmatpush1.msra.mxu0 %v896
  %1601 = vmatprep.subr.mxu0 %v912
  %1602 = vmatpush1.msra.mxu0 %v911
  %1603 = vmatprep.subr.mxu0 %v896
  %1604 = vmatpush1.msra.mxu0 %v895
  %1605 = vmatprep.subr.mxu0 %v911
  %1606 = vmatpush1.msra.mxu0 %v910
  %1607 = vmatprep.subr.mxu0 %v895
  %1608 = vmatpush1.msra.mxu0 %v894
  %1609 = vmatprep.subr.mxu0 0.0
  %1610 = vmatpush2.msra.mxu0 0.0
  %1611 = vmatprep.subr.mxu0 0.0
  %1612 = vmatpush2.msra.mxu0 0.0
  %1613 = vmatprep.subr.mxu0 0.0
  %1614 = vmatpush2.msra.mxu0 0.0
  %1615 = vmatprep.subr.mxu0 0.0
  %1616 = vmatpush2.msra.mxu0 0.0
  %1617 = vmatprep.subr.mxu0 0.0
  %1618 = vmatpush2.msra.mxu0 0.0
  %1619 = vmatprep.subr.mxu0 0.0
  %1620 = vmatpush2.msra.mxu0 0.0
  %1621 = vmatprep.subr.mxu0 0.0
  %1622 = vmatpush2.msra.mxu0 0.0
  %1623 = vmatprep.subr.mxu0 0.0
  %1624 = vmatpush2.msra.mxu0 0.0
  %1625 = vmatprep.subr.mxu0 0.0
  %1626 = vmatpush2.msra.mxu0 0.0
  %1627 = vmatprep.subr.mxu0 0.0
  %1628 = vmatpush2.msra.mxu0 0.0
  %1629 = vmatprep.subr.mxu0 0.0
  %1630 = vmatpush2.msra.mxu0 0.0
  %1631 = vmatprep.subr.mxu0 0.0
  %1632 = vmatpush2.msra.mxu0 0.0
  %1633 = vmatprep.subr.mxu0 0.0
  %1634 = vmatpush2.msra.mxu0 0.0
  %1635 = vmatprep.subr.mxu0 0.0
  %1636 = vmatpush2.msra.mxu0 0.0
  %1637 = vmatprep.subr.mxu0 0.0
  %1638 = vmatpush2.msra.mxu0 0.0
  %1639 = vmatprep.subr.mxu0 0.0
  %1640 = vmatpush2.msra.mxu0 0.0
  %1641 = vmatprep.mubr.f32.mxu0 0.0
  %1642 = vmatmul.mubr.f32.gmra.mxu0 %v943
  %v1643 = vpop.f32.mrf.mxu0
  %v1644 = vadd.f32 %v924, %v1643
  %v1645 = vpop.f32.mrf.mxu0
  %v1646 = vadd.f32 %v924, %v1645
  %1647 = vmatprep.mubr.f32.mxu0 0.0
  %1648 = vmatmul.mubr.f32.gmra.mxu0 %v946
  %v1649 = vpop.f32.mrf.mxu0
  %v1650 = vadd.f32 %v929, %v1649
  %v1651 = vpop.f32.mrf.mxu0
  %v1652 = vadd.f32 %v929, %v1651
  %1653 = vmatprep.mubr.f32.mxu0 0.0
  %1654 = vmatmul.mubr.f32.gmra.mxu0 %v949
  %v1655 = vpop.f32.mrf.mxu0
  %v1656 = vadd.f32 %v934, %v1655
  %v1657 = vpop.f32.mrf.mxu0
  %v1658 = vadd.f32 %v934, %v1657
  %1659 = vmatprep.mubr.f32.mxu0 0.0
  %1660 = vmatmul.mubr.f32.gmra.mxu0 %v952
  %v1661 = vpop.f32.mrf.mxu0
  %v1662 = vadd.f32 %v939, %v1661
  %v1663 = vpop.f32.mrf.mxu0
  %v1664 = vadd.f32 %v939, %v1663
  %1665 = vdwg.mxu0
  %v1666 = vmax.f32 %v1021, 0.0
  %v1667 = vmax.f32 %v1023, 0.0
  %v1668 = vmax.f32 %v1110, 0.0
  %v1669 = vmax.f32 %v1112, 0.0
  %v1670 = vmax.f32 %v1199, 0.0
  %v1671 = vmax.f32 %v1201, 0.0
  %v1672 = vmax.f32 %v1288, 0.0
  %v1673 = vmax.f32 %v1290, 0.0
  %v1674 = vmax.f32 %v1377, 0.0
  %v1675 = vmax.f32 %v1379, 0.0
  %v1676 = vmax.f32 %v1466, 0.0
  %v1677 = vmax.f32 %v1468, 0.0
  %v1678 = vmax.f32 %v1555, 0.0
  %v1679 = vmax.f32 %v1557, 0.0
  %v1680 = vmax.f32 %v1644, 0.0
  %v1681 = vmax.f32 %v1646, 0.0
  %v1682 = vmax.f32 %v1027, 0.0
  %v1683 = vmax.f32 %v1029, 0.0
  %v1684 = vmax.f32 %v1116, 0.0
  %v1685 = vmax.f32 %v1118, 0.0
  %v1686 = vmax.f32 %v1205, 0.0
  %v1687 = vmax.f32 %v1207, 0.0
  %v1688 = vmax.f32 %v1294, 0.0
  %v1689 = vmax.f32 %v1296, 0.0
  %v1690 = vmax.f32 %v1383, 0.0
  %v1691 = vmax.f32 %v1385, 0.0
  %v1692 = vmax.f32 %v1472, 0.0
  %v1693 = vmax.f32 %v1474, 0.0
  %v1694 = vmax.f32 %v1561, 0.0
  %v1695 = vmax.f32 %v1563, 0.0
  %v1696 = vmax.f32 %v1650, 0.0
  %v1697 = vmax.f32 %v1652, 0.0
  %v1698 = vmax.f32 %v1033, 0.0
  %v1699 = vmax.f32 %v1035, 0.0
  %v1700 = vmax.f32 %v1122, 0.0
  %v1701 = vmax.f32 %v1124, 0.0
  %v1702 = vmax.f32 %v1211, 0.0
  %v1703 = vmax.f32 %v1213, 0.0
  %v1704 = vmax.f32 %v1300, 0.0
  %v1705 = vmax.f32 %v1302, 0.0
  %v1706 = vmax.f32 %v1389, 0.0
  %v1707 = vmax.f32 %v1391, 0.0
  %v1708 = vmax.f32 %v1478, 0.0
  %v1709 = vmax.f32 %v1480, 0.0
  %v1710 = vmax.f32 %v1567, 0.0
  %v1711 = vmax.f32 %v1569, 0.0
  %v1712 = vmax.f32 %v1656, 0.0
  %v1713 = vmax.f32 %v1658, 0.0
  %v1714 = vmax.f32 %v1039, 0.0
  %v1715 = vmax.f32 %v1041, 0.0
  %v1716 = vmax.f32 %v1128, 0.0
  %v1717 = vmax.f32 %v1130, 0.0
  %v1718 = vmax.f32 %v1217, 0.0
  %v1719 = vmax.f32 %v1219, 0.0
  %v1720 = vmax.f32 %v1306, 0.0
  %v1721 = vmax.f32 %v1308, 0.0
  %v1722 = vmax.f32 %v1395, 0.0
  %v1723 = vmax.f32 %v1397, 0.0
  %v1724 = vmax.f32 %v1484, 0.0
  %v1725 = vmax.f32 %v1486, 0.0
  %v1726 = vmax.f32 %v1573, 0.0
  %v1727 = vmax.f32 %v1575, 0.0
  %v1728 = vmax.f32 %v1662, 0.0
  %v1729 = vmax.f32 %v1664, 0.0
  %v1730 = vmax.f32 %v1666, %v1667
  %v1731 = vmax.f32 %v1682, %v1683
  %v1732 = vmax.f32 %v1698, %v1699
  %v1733 = vmax.f32 %v1714, %v1715
  %v1734 = vmax.f32 %v1668, %v1669
  %v1735 = vmax.f32 %v1684, %v1685
  %v1736 = vmax.f32 %v1700, %v1701
  %v1737 = vmax.f32 %v1716, %v1717
  %v1738 = vmax.f32 %v1670, %v1671
  %v1739 = vmax.f32 %v1686, %v1687
  %v1740 = vmax.f32 %v1702, %v1703
  %v1741 = vmax.f32 %v1718, %v1719
  %v1742 = vmax.f32 %v1672, %v1673
  %v1743 = vmax.f32 %v1688, %v1689
  %v1744 = vmax.f32 %v1704, %v1705
  %v1745 = vmax.f32 %v1720, %v1721
  %v1746 = vmax.f32 %v1674, %v1675
  %v1747 = vmax.f32 %v1690, %v1691
  %v1748 = vmax.f32 %v1706, %v1707
  %v1749 = vmax.f32 %v1722, %v1723
  %v1750 = vmax.f32 %v1676, %v1677
  %v1751 = vmax.f32 %v1692, %v1693
  %v1752 = vmax.f32 %v1708, %v1709
  %v1753 = vmax.f32 %v1724, %v1725
  %v1754 = vmax.f32 %v1678, %v1679
  %v1755 = vmax.f32 %v1694, %v1695
  %v1756 = vmax.f32 %v1710, %v1711
  %v1757 = vmax.f32 %v1726, %v1727
  %v1758 = vmax.f32 %v1680, %v1681
  %v1759 = vmax.f32 %v1696, %v1697
  %v1760 = vmax.f32 %v1712, %v1713
  %v1761 = vmax.f32 %v1728, %v1729
  %v1762 = vld [vmem:[%s5] sm:$0xff]
  %v1763 = vld [vmem:[%s5 + $0x8] sm:$0xff]
  %v1764 = vld [vmem:[%s5 + $0x10] sm:$0xff]
  %v1765 = vld [vmem:[%s5 + $0x18] sm:$0xff]
  %v1766 = vld [vmem:[%s5 + $0x20] sm:$0xff]
  %v1767 = vld [vmem:[%s5 + $0x28] sm:$0xff]
  %v1768 = vld [vmem:[%s5 + $0x30] sm:$0xff]
  %v1769 = vld [vmem:[%s5 + $0x38] sm:$0xff]
  %v1770 = vld [vmem:[%s6] sm:$0xff]
  %v1771 = vld [vmem:[%s6 + $0x8] sm:$0xff]
  %v1772 = vld [vmem:[%s6 + $0x10] sm:$0xff]
  %v1773 = vld [vmem:[%s6 + $0x18] sm:$0xff]
  %1775 = vset.pattern.permute.xlu0 0
  %1776 = vperm.xlu0 %1775, %v1770
  %v1777 = vpop.permute.xlu0 %1776
  %1780 = vset.pattern.permute.xlu0 0
  %1781 = vperm.xlu0 %1780, %v1771
  %v1782 = vpop.permute.xlu0 %1781
  %1785 = vset.pattern.permute.xlu0 0
  %1786 = vperm.xlu0 %1785, %v1772
  %v1787 = vpop.permute.xlu0 %1786
  %1790 = vset.pattern.permute.xlu0 0
  %1791 = vperm.xlu0 %1790, %v1773
  %v1792 = vpop.permute.xlu0 %1791
  %1794 = vmatprep.subr.mxu0 0.0
  %1795 = vmatpush1.msra.mxu0 %v1745
  %1796 = vmatprep.subr.mxu0 0.0
  %1797 = vmatpush1.msra.mxu0 %v1744
  %1798 = vmatprep.subr.mxu0 0.0
  %1799 = vmatpush1.msra.mxu0 %v1743
  %1800 = vmatprep.subr.mxu0 0.0
  %1801 = vmatpush1.msra.mxu0 %v1742
  %1802 = vmatprep.subr.mxu0 0.0
  %1803 = vmatpush1.msra.mxu0 %v1741
  %1804 = vmatprep.subr.mxu0 0.0
  %1805 = vmatpush1.msra.mxu0 %v1740
  %1806 = vmatprep.subr.mxu0 0.0
  %1807 = vmatpush1.msra.mxu0 %v1739
  %1808 = vmatprep.subr.mxu0 0.0
  %1809 = vmatpush1.msra.mxu0 %v1738
  %1810 = vmatprep.subr.mxu0 0.0
  %1811 = vmatpush1.msra.mxu0 %v1737
  %1812 = vmatprep.subr.mxu0 0.0
  %1813 = vmatpush1.msra.mxu0 %v1736
  %1814 = vmatprep.subr.mxu0 0.0
  %1815 = vmatpush1.msra.mxu0 %v1735
  %1816 = vmatprep.subr.mxu0 0.0
  %1817 = vmatpush1.msra.mxu0 %v1734
  %1818 = vmatprep.subr.mxu0 0.0
  %1819 = vmatpush1.msra.mxu0 %v1733
  %1820 = vmatprep.subr.mxu0 0.0
  %1821 = vmatpush1.msra.mxu0 %v1732
  %1822 = vmatprep.subr.mxu0 0.0
  %1823 = vmatpush1.msra.mxu0 %v1731
  %1824 = vmatprep.subr.mxu0 0.0
  %1825 = vmatpush1.msra.mxu0 %v1730
  %1826 = vmatprep.subr.mxu0 0.0
  %1827 = vmatpush2.msra.mxu0 %v1761
  %1828 = vmatprep.subr.mxu0 0.0
  %1829 = vmatpush2.msra.mxu0 %v1760
  %1830 = vmatprep.subr.mxu0 0.0
  %1831 = vmatpush2.msra.mxu0 %v1759
  %1832 = vmatprep.subr.mxu0 0.0
  %1833 = vmatpush2.msra.mxu0 %v1758
  %1834 = vmatprep.subr.mxu0 0.0
  %1835 = vmatpush2.msra.mxu0 %v1757
  %1836 = vmatprep.subr.mxu0 0.0
  %1837 = vmatpush2.msra.mxu0 %v1756
  %1838 = vmatprep.subr.mxu0 0.0
  %1839 = vmatpush2.msra.mxu0 %v1755
  %1840 = vmatprep.subr.mxu0 0.0
  %1841 = vmatpush2.msra.mxu0 %v1754
  %1842 = vmatprep.subr.mxu0 0.0
  %1843 = vmatpush2.msra.mxu0 %v1753
  %1844 = vmatprep.subr.mxu0 0.0
  %1845 = vmatpush2.msra.mxu0 %v1752
  %1846 = vmatprep.subr.mxu0 0.0
  %1847 = vmatpush2.msra.mxu0 %v1751
  %1848 = vmatprep.subr.mxu0 0.0
  %1849 = vmatpush2.msra.mxu0 %v1750
  %1850 = vmatprep.subr.mxu0 0.0
  %1851 = vmatpush2.msra.mxu0 %v1749
  %1852 = vmatprep.subr.mxu0 0.0
  %1853 = vmatpush2.msra.mxu0 %v1748
  %1854 = vmatprep.subr.mxu0 0.0
  %1855 = vmatpush2.msra.mxu0 %v1747
  %1856 = vmatprep.subr.mxu0 0.0
  %1857 = vmatpush2.msra.mxu0 %v1746
  %1858 = vmatprep.mubr.f32.mxu0 %v1763
  %1859 = vmatmul.mubr.f32.gmra.mxu0 %v1762
  %v1860 = vpop.f32.mrf.mxu0
  %v1861 = vadd.f32 %v1777, %v1860
  %v1862 = vpop.f32.mrf.mxu0
  %1863 = vmatprep.mubr.f32.mxu0 %v1765
  %1864 = vmatmul.mubr.f32.gmra.mxu0 %v1764
  %v1865 = vpop.f32.mrf.mxu0
  %v1866 = vadd.f32 %v1782, %v1865
  %v1867 = vpop.f32.mrf.mxu0
  %1868 = vmatprep.mubr.f32.mxu0 %v1767
  %1869 = vmatmul.mubr.f32.gmra.mxu0 %v1766
  %v1870 = vpop.f32.mrf.mxu0
  %v1871 = vadd.f32 %v1787, %v1870
  %v1872 = vpop.f32.mrf.mxu0
  %1873 = vmatprep.mubr.f32.mxu0 %v1769
  %1874 = vmatmul.mubr.f32.gmra.mxu0 %v1768
  %v1875 = vpop.f32.mrf.mxu0
  %v1876 = vadd.f32 %v1792, %v1875
  %v1877 = vpop.f32.mrf.mxu0
  %1878 = vdwg.mxu0
  %v1879 = vmax.f32 %v1861, 0.0
  %v1880 = vmax.f32 %v1866, 0.0
  %v1881 = vmax.f32 %v1871, 0.0
  %v1882 = vmax.f32 %v1876, 0.0
  %v1883 = vld [vmem:[%s7] sm:$0xff]
  %v1884 = vld [vmem:[%s7 + $0x8] sm:$0xff]
  %v1885 = vld [vmem:[%s7 + $0x10] sm:$0xff]
  %v1886 = vld [vmem:[%s7 + $0x18] sm:$0xff]
  %v1887 = vld [vmem:[%s8] sm:$0xff]
  %v1888 = vld [vmem:[%s8 + $0x8] sm:$0xff]
  %v1889 = vld [vmem:[%s8 + $0x10] sm:$0xff]
  %v1890 = vld [vmem:[%s8 + $0x18] sm:$0xff]
  %1892 = vset.pattern.permute.xlu0 0
  %1893 = vperm.xlu0 %1892, %v1887
  %v1894 = vpop.permute.xlu0 %1893
  %1897 = vset.pattern.permute.xlu0 0
  %1898 = vperm.xlu0 %1897, %v1888
  %v1899 = vpop.permute.xlu0 %1898
  %1902 = vset.pattern.permute.xlu0 0
  %1903 = vperm.xlu0 %1902, %v1889
  %v1904 = vpop.permute.xlu0 %1903
  %1907 = vset.pattern.permute.xlu0 0
  %1908 = vperm.xlu0 %1907, %v1890
  %v1909 = vpop.permute.xlu0 %1908
  %vm1911 = vcmask 261120
  %v1913 = vsel %vm1911, %v1883, 0
  %v1916 = vsel %vm1911, %v1884, 0
  %v1919 = vsel %vm1911, %v1885, 0
  %v1922 = vsel %vm1911, %v1886, 0
  %1924 = vmatprep.subr.mxu0 0.0
  %1925 = vmatpush1.msra.mxu0 0.0
  %1926 = vmatprep.subr.mxu0 0.0
  %1927 = vmatpush1.msra.mxu0 0.0
  %1928 = vmatprep.subr.mxu0 0.0
  %1929 = vmatpush1.msra.mxu0 0.0
  %1930 = vmatprep.subr.mxu0 0.0
  %1931 = vmatpush1.msra.mxu0 0.0
  %1932 = vmatprep.subr.mxu0 0.0
  %1933 = vmatpush1.msra.mxu0 0.0
  %1934 = vmatprep.subr.mxu0 0.0
  %1935 = vmatpush1.msra.mxu0 0.0
  %1936 = vmatprep.subr.mxu0 0.0
  %1937 = vmatpush1.msra.mxu0 0.0
  %1938 = vmatprep.subr.mxu0 0.0
  %1939 = vmatpush1.msra.mxu0 0.0
  %1940 = vmatprep.subr.mxu0 0.0
  %1941 = vmatpush1.msra.mxu0 0.0
  %1942 = vmatprep.subr.mxu0 0.0
  %1943 = vmatpush1.msra.mxu0 0.0
  %1944 = vmatprep.subr.mxu0 0.0
  %1945 = vmatpush1.msra.mxu0 0.0
  %1946 = vmatprep.subr.mxu0 0.0
  %1947 = vmatpush1.msra.mxu0 0.0
  %1948 = vmatprep.subr.mxu0 0.0
  %1949 = vmatpush1.msra.mxu0 %v1882
  %1950 = vmatprep.subr.mxu0 0.0
  %1951 = vmatpush1.msra.mxu0 %v1881
  %1952 = vmatprep.subr.mxu0 0.0
  %1953 = vmatpush1.msra.mxu0 %v1880
  %1954 = vmatprep.subr.mxu0 0.0
  %1955 = vmatpush1.msra.mxu0 %v1879
  %1956 = vmatprep.subr.mxu0 0.0
  %1957 = vmatpush2.msra.mxu0 0.0
  %1958 = vmatprep.subr.mxu0 0.0
  %1959 = vmatpush2.msra.mxu0 0.0
  %1960 = vmatprep.subr.mxu0 0.0
  %1961 = vmatpush2.msra.mxu0 0.0
  %1962 = vmatprep.subr.mxu0 0.0
  %1963 = vmatpush2.msra.mxu0 0.0
  %1964 = vmatprep.subr.mxu0 0.0
  %1965 = vmatpush2.msra.mxu0 0.0
  %1966 = vmatprep.subr.mxu0 0.0
  %1967 = vmatpush2.msra.mxu0 0.0
  %1968 = vmatprep.subr.mxu0 0.0
  %1969 = vmatpush2.msra.mxu0 0.0
  %1970 = vmatprep.subr.mxu0 0.0
  %1971 = vmatpush2.msra.mxu0 0.0
  %1972 = vmatprep.subr.mxu0 0.0
  %1973 = vmatpush2.msra.mxu0 0.0
  %1974 = vmatprep.subr.mxu0 0.0
  %1975 = vmatpush2.msra.mxu0 0.0
  %1976 = vmatprep.subr.mxu0 0.0
  %1977 = vmatpush2.msra.mxu0 0.0
  %1978 = vmatprep.subr.mxu0 0.0
  %1979 = vmatpush2.msra.mxu0 0.0
  %1980 = vmatprep.subr.mxu0 0.0
  %1981 = vmatpush2.msra.mxu0 0.0
  %1982 = vmatprep.subr.mxu0 0.0
  %1983 = vmatpush2.msra.mxu0 0.0
  %1984 = vmatprep.subr.mxu0 0.0
  %1985 = vmatpush2.msra.mxu0 0.0
  %1986 = vmatprep.subr.mxu0 0.0
  %1987 = vmatpush2.msra.mxu0 0.0
  %1988 = vmatprep.mubr.f32.mxu0 0.0
  %1989 = vmatmul.mubr.f32.gmra.mxu0 %v1913
  %v1990 = vpop.f32.mrf.mxu0
  %v1991 = vadd.f32 %v1894, %v1990
  %v1992 = vpop.f32.mrf.mxu0
  %1993 = vmatprep.mubr.f32.mxu0 0.0
  %1994 = vmatmul.mubr.f32.gmra.mxu0 %v1916
  %v1995 = vpop.f32.mrf.mxu0
  %v1996 = vadd.f32 %v1899, %v1995
  %v1997 = vpop.f32.mrf.mxu0
  %1998 = vmatprep.mubr.f32.mxu0 0.0
  %1999 = vmatmul.mubr.f32.gmra.mxu0 %v1919
  %v2000 = vpop.f32.mrf.mxu0
  %v2001 = vadd.f32 %v1904, %v2000
  %v2002 = vpop.f32.mrf.mxu0
  %2003 = vmatprep.mubr.f32.mxu0 0.0
  %2004 = vmatmul.mubr.f32.gmra.mxu0 %v1922
  %v2005 = vpop.f32.mrf.mxu0
  %v2006 = vadd.f32 %v1909, %v2005
  %v2007 = vpop.f32.mrf.mxu0
  %2008 = vdwg.mxu0
  %v2009 = vmax.f32 %v1991, 0.0
  %v2010 = vmax.f32 %v1996, 0.0
  %v2011 = vmax.f32 %v2001, 0.0
  %v2012 = vmax.f32 %v2006, 0.0
  %v2013 = vld [vmem:[%s9] sm:$0xff]
  %v2014 = vld [vmem:[%s9 + $0x8] sm:$0xff]
  %v2015 = vld [vmem:[%s9 + $0x10] sm:$0xff]
  %v2016 = vld [vmem:[%s9 + $0x18] sm:$0xff]
  %v2017 = vld [vmem:[%s10] sm:$0xff]
  %v2018 = vld [vmem:[%s10 + $0x8] sm:$0xff]
  %v2019 = vld [vmem:[%s10 + $0x10] sm:$0xff]
  %v2020 = vld [vmem:[%s10 + $0x18] sm:$0xff]
  %2022 = vset.pattern.permute.xlu0 0
  %2023 = vperm.xlu0 %2022, %v2017
  %v2024 = vpop.permute.xlu0 %2023
  %2027 = vset.pattern.permute.xlu0 0
  %2028 = vperm.xlu0 %2027, %v2018
  %v2029 = vpop.permute.xlu0 %2028
  %2032 = vset.pattern.permute.xlu0 0
  %2033 = vperm.xlu0 %2032, %v2019
  %v2034 = vpop.permute.xlu0 %2033
  %2037 = vset.pattern.permute.xlu0 0
  %2038 = vperm.xlu0 %2037, %v2020
  %v2039 = vpop.permute.xlu0 %2038
  %v2042 = vsel %vm1911, %v2013, 0
  %v2045 = vsel %vm1911, %v2014, 0
  %v2048 = vsel %vm1911, %v2015, 0
  %v2051 = vsel %vm1911, %v2016, 0
  %2053 = vmatprep.subr.mxu0 0.0
  %2054 = vmatpush1.msra.mxu0 0.0
  %2055 = vmatprep.subr.mxu0 0.0
  %2056 = vmatpush1.msra.mxu0 0.0
  %2057 = vmatprep.subr.mxu0 0.0
  %2058 = vmatpush1.msra.mxu0 0.0
  %2059 = vmatprep.subr.mxu0 0.0
  %2060 = vmatpush1.msra.mxu0 0.0
  %2061 = vmatprep.subr.mxu0 0.0
  %2062 = vmatpush1.msra.mxu0 0.0
  %2063 = vmatprep.subr.mxu0 0.0
  %2064 = vmatpush1.msra.mxu0 0.0
  %2065 = vmatprep.subr.mxu0 0.0
  %2066 = vmatpush1.msra.mxu0 0.0
  %2067 = vmatprep.subr.mxu0 0.0
  %2068 = vmatpush1.msra.mxu0 0.0
  %2069 = vmatprep.subr.mxu0 0.0
  %2070 = vmatpush1.msra.mxu0 0.0
  %2071 = vmatprep.subr.mxu0 0.0
  %2072 = vmatpush1.msra.mxu0 0.0
  %2073 = vmatprep.subr.mxu0 0.0
  %2074 = vmatpush1.msra.mxu0 0.0
  %2075 = vmatprep.subr.mxu0 0.0
  %2076 = vmatpush1.msra.mxu0 0.0
  %2077 = vmatprep.subr.mxu0 0.0
  %2078 = vmatpush1.msra.mxu0 %v2012
  %2079 = vmatprep.subr.mxu0 0.0
  %2080 = vmatpush1.msra.mxu0 %v2011
  %2081 = vmatprep.subr.mxu0 0.0
  %2082 = vmatpush1.msra.mxu0 %v2010
  %2083 = vmatprep.subr.mxu0 0.0
  %2084 = vmatpush1.msra.mxu0 %v2009
  %2085 = vmatprep.subr.mxu0 0.0
  %2086 = vmatpush2.msra.mxu0 0.0
  %2087 = vmatprep.subr.mxu0 0.0
  %2088 = vmatpush2.msra.mxu0 0.0
  %2089 = vmatprep.subr.mxu0 0.0
  %2090 = vmatpush2.msra.mxu0 0.0
  %2091 = vmatprep.subr.mxu0 0.0
  %2092 = vmatpush2.msra.mxu0 0.0
  %2093 = vmatprep.subr.mxu0 0.0
  %2094 = vmatpush2.msra.mxu0 0.0
  %2095 = vmatprep.subr.mxu0 0.0
  %2096 = vmatpush2.msra.mxu0 0.0
  %2097 = vmatprep.subr.mxu0 0.0
  %2098 = vmatpush2.msra.mxu0 0.0
  %2099 = vmatprep.subr.mxu0 0.0
  %2100 = vmatpush2.msra.mxu0 0.0
  %2101 = vmatprep.subr.mxu0 0.0
  %2102 = vmatpush2.msra.mxu0 0.0
  %2103 = vmatprep.subr.mxu0 0.0
  %2104 = vmatpush2.msra.mxu0 0.0
  %2105 = vmatprep.subr.mxu0 0.0
  %2106 = vmatpush2.msra.mxu0 0.0
  %2107 = vmatprep.subr.mxu0 0.0
  %2108 = vmatpush2.msra.mxu0 0.0
  %2109 = vmatprep.subr.mxu0 0.0
  %2110 = vmatpush2.msra.mxu0 0.0
  %2111 = vmatprep.subr.mxu0 0.0
  %2112 = vmatpush2.msra.mxu0 0.0
  %2113 = vmatprep.subr.mxu0 0.0
  %2114 = vmatpush2.msra.mxu0 0.0
  %2115 = vmatprep.subr.mxu0 0.0
  %2116 = vmatpush2.msra.mxu0 0.0
  %2117 = vmatprep.mubr.f32.mxu0 0.0
  %2118 = vmatmul.mubr.f32.gmra.mxu0 %v2042
  %v2119 = vpop.f32.mrf.mxu0
  %v2120 = vadd.f32 %v2024, %v2119
  %v2121 = vpop.f32.mrf.mxu0
  %2122 = vmatprep.mubr.f32.mxu0 0.0
  %2123 = vmatmul.mubr.f32.gmra.mxu0 %v2045
  %v2124 = vpop.f32.mrf.mxu0
  %v2125 = vadd.f32 %v2029, %v2124
  %v2126 = vpop.f32.mrf.mxu0
  %2127 = vmatprep.mubr.f32.mxu0 0.0
  %2128 = vmatmul.mubr.f32.gmra.mxu0 %v2048
  %v2129 = vpop.f32.mrf.mxu0
  %v2130 = vadd.f32 %v2034, %v2129
  %v2131 = vpop.f32.mrf.mxu0
  %2132 = vmatprep.mubr.f32.mxu0 0.0
  %2133 = vmatmul.mubr.f32.gmra.mxu0 %v2051
  %v2134 = vpop.f32.mrf.mxu0
  %v2135 = vadd.f32 %v2039, %v2134
  %v2136 = vpop.f32.mrf.mxu0
  %2137 = vdwg.mxu0
  %v2138 = vmax.f32 %v2120, 0.0
  %v2139 = vmax.f32 %v2125, 0.0
  %v2140 = vmax.f32 %v2130, 0.0
  %v2141 = vmax.f32 %v2135, 0.0
  %v2142 = vld [vmem:[%s11] sm:$0xff]
  %v2143 = vld [vmem:[%s12] sm:$0xff]
  %2145 = vset.pattern.permute.xlu0 0
  %2146 = vperm.xlu0 %2145, %v2143
  %v2147 = vpop.permute.xlu0 %2146
  %v2150 = vsel %vm1911, %v2142, 0
  %2152 = vmatprep.subr.mxu0 0.0
  %2153 = vmatpush1.msra.mxu0 0.0
  %2154 = vmatprep.subr.mxu0 0.0
  %2155 = vmatpush1.msra.mxu0 0.0
  %2156 = vmatprep.subr.mxu0 0.0
  %2157 = vmatpush1.msra.mxu0 0.0
  %2158 = vmatprep.subr.mxu0 0.0
  %2159 = vmatpush1.msra.mxu0 0.0
  %2160 = vmatprep.subr.mxu0 0.0
  %2161 = vmatpush1.msra.mxu0 0.0
  %2162 = vmatprep.subr.mxu0 0.0
  %2163 = vmatpush1.msra.mxu0 0.0
  %2164 = vmatprep.subr.mxu0 0.0
  %2165 = vmatpush1.msra.mxu0 0.0
  %2166 = vmatprep.subr.mxu0 0.0
  %2167 = vmatpush1.msra.mxu0 0.0
  %2168 = vmatprep.subr.mxu0 0.0
  %2169 = vmatpush1.msra.mxu0 0.0
  %2170 = vmatprep.subr.mxu0 0.0
  %2171 = vmatpush1.msra.mxu0 0.0
  %2172 = vmatprep.subr.mxu0 0.0
  %2173 = vmatpush1.msra.mxu0 0.0
  %2174 = vmatprep.subr.mxu0 0.0
  %2175 = vmatpush1.msra.mxu0 0.0
  %2176 = vmatprep.subr.mxu0 0.0
  %2177 = vmatpush1.msra.mxu0 %v2141
  %2178 = vmatprep.subr.mxu0 0.0
  %2179 = vmatpush1.msra.mxu0 %v2140
  %2180 = vmatprep.subr.mxu0 0.0
  %2181 = vmatpush1.msra.mxu0 %v2139
  %2182 = vmatprep.subr.mxu0 0.0
  %2183 = vmatpush1.msra.mxu0 %v2138
  %2184 = vmatprep.subr.mxu0 0.0
  %2185 = vmatpush2.msra.mxu0 0.0
  %2186 = vmatprep.subr.mxu0 0.0
  %2187 = vmatpush2.msra.mxu0 0.0
  %2188 = vmatprep.subr.mxu0 0.0
  %2189 = vmatpush2.msra.mxu0 0.0
  %2190 = vmatprep.subr.mxu0 0.0
  %2191 = vmatpush2.msra.mxu0 0.0
  %2192 = vmatprep.subr.mxu0 0.0
  %2193 = vmatpush2.msra.mxu0 0.0
  %2194 = vmatprep.subr.mxu0 0.0
  %2195 = vmatpush2.msra.mxu0 0.0
  %2196 = vmatprep.subr.mxu0 0.0
  %2197 = vmatpush2.msra.mxu0 0.0
  %2198 = vmatprep.subr.mxu0 0.0
  %2199 = vmatpush2.msra.mxu0 0.0
  %2200 = vmatprep.subr.mxu0 0.0
  %2201 = vmatpush2.msra.mxu0 0.0
  %2202 = vmatprep.subr.mxu0 0.0
  %2203 = vmatpush2.msra.mxu0 0.0
  %2204 = vmatprep.subr.mxu0 0.0
  %2205 = vmatpush2.msra.mxu0 0.0
  %2206 = vmatprep.subr.mxu0 0.0
  %2207 = vmatpush2.msra.mxu0 0.0
  %2208 = vmatprep.subr.mxu0 0.0
  %2209 = vmatpush2.msra.mxu0 0.0
  %2210 = vmatprep.subr.mxu0 0.0
  %2211 = vmatpush2.msra.mxu0 0.0
  %2212 = vmatprep.subr.mxu0 0.0
  %2213 = vmatpush2.msra.mxu0 0.0
  %2214 = vmatprep.subr.mxu0 0.0
  %2215 = vmatpush2.msra.mxu0 0.0
  %2216 = vmatprep.mubr.f32.mxu0 0.0
  %2217 = vmatmul.mubr.f32.gmra.mxu0 %v2150
  %v2218 = vpop.f32.mrf.mxu0
  %v2219 = vadd.f32 %v2147, %v2218
  %v2220 = vpop.f32.mrf.mxu0
  %2221 = vdwg.mxu0
  %2222 = vst [vmem:[%s13] sm:$0xff] %v2219
  // Predicated region
  $region54: #{dqn_cnn_forward.1} parent=0 // pred_check
    _
  $region55: #{dqn_cnn_forward.1} parent=0 // pred_check_branch
    %2224 = sbr.rel (0) target = $region57
  $region56: #{dqn_cnn_forward.1} parent=0 // pred_region
    _
  $region57: #{dqn_cnn_forward.1} parent=0 // pred_fallthru
    _
  // Predicated region
  $region58: #{dqn_cnn_forward.1} parent=0 // pred_check
    _
  $region59: #{dqn_cnn_forward.1} parent=0 // pred_check_branch
    %2226 = sbr.rel (0) target = $region61
  $region60: #{dqn_cnn_forward.1} parent=0 // pred_region
    _
  $region61: #{dqn_cnn_forward.1} parent=0 // pred_fallthru
    _

</llo_original>
